<compile_context>
chip_gen: v5e
topology: v5e:2x2
jax: 0.10.0
libtpu: 0.0.40
codegen_flags: <defaults>
</compile_context>

<pallas_src>
import functools

import jax
import jax.numpy as jnp
from jax.experimental import pallas as pl
from jax.experimental.pallas import tpu as pltpu


def _feedforward_kernel(x_ref, w1_ref, g1_ref, b1_ref, dwk_ref, g2_ref, b2_ref,
                        w3_ref, o_ref, a1_ref, *, TH, W, Wp, Chp, inverse,
                        row_align):
    t = pl.program_id(1)
    start = pl.multiple_of(t * (TH * Wp), row_align)

    # TH + 2 padded image rows (1-row halo on each side), already flattened to
    # (rows * Wp, Cp) and already in the MXU input dtype, so the load feeds the
    # first matmul directly (no in-kernel cast or reshape).
    xt = x_ref[pl.ds(start, (TH + 2) * Wp), :]               # ((TH+2)*Wp, Cp)

    md = w1_ref.dtype                                        # MXU input dtype (bf16)

    # ---- 1x1 conv: dim -> dim*mult (no bias), MXU, f32 accumulation ----------
    h1 = jnp.dot(xt, w1_ref[...], preferred_element_type=jnp.float32)

    # ---- GDN #1: y = x * rsqrt(beta + gamma @ x^2)   (x * sqrt(.) if inverse)
    s1 = jnp.dot((h1 * h1).astype(md), g1_ref[...],
                 preferred_element_type=jnp.float32) + b1_ref[...]
    a1 = h1 * (jnp.sqrt(s1) if inverse else jax.lax.rsqrt(s1))
    a1_ref[...] = a1.reshape(TH + 2, Wp, Chp)                # stage for shifted reads

    # ---- depthwise 3x3, stride 1 (padding=1 baked into the zero halo) --------
    # 9 whole-tile FMAs into a register-resident accumulator; only 3 distinct
    # column-shifted loads, reused across the 3 row offsets; taps hoisted.
    dwk = dwk_ref[...]                                       # (9, Chp) f32
    taps = [dwk[k:k + 1, :] for k in range(9)]               # hoisted broadcasts
    h2 = jnp.zeros((TH, W, Chp), jnp.float32)
    for dx in range(3):
        col = a1_ref[:, dx:dx + W, :]                        # (TH+2, W, Chp)
        for dy in range(3):
            h2 = h2 + col[dy:dy + TH] * taps[dy * 3 + dx]
    h2 = h2.reshape(TH * W, Chp)

    # ---- GDN #2 ---------------------------------------------------------------
    s2 = jnp.dot((h2 * h2).astype(md), g2_ref[...],
                 preferred_element_type=jnp.float32) + b2_ref[...]
    a2 = h2 * (jnp.sqrt(s2) if inverse else jax.lax.rsqrt(s2))

    # ---- 1x1 conv: dim*mult -> dim (no bias) ----------------------------------
    o_ref[...] = jnp.dot(a2.astype(md), w3_ref[...],
                         preferred_element_type=jnp.float32).astype(o_ref.dtype)


def _round_up(n, m):
    return ((n + m - 1) // m) * m


def _pick_row_tile(H, Wp, Cp, Chp, in_itemsize, vmem_budget=40 * 1024 * 1024):
    """Largest even row-tile <= 32 dividing H (>=2 tiles) whose per-tile VMEM fits."""
    # Fixed cost: padded image (double-buffered across batch) + replicated weights.
    fixed = 2 * (H + 2) * Wp * Cp * in_itemsize
    fixed += 2 * (Cp * Chp + 2 * Chp * Chp + Chp * Cp) * 2 + (2 + 9) * Chp * 4
    best = 1
    for cand in (2, 4, 8, 16, 32):
        if cand >= H or H % cand:
            continue
        # a1 scratch + a few live ((TH+2)*Wp, Chp) f32 temporaries + output tile (2x).
        tile = 4 * (cand + 2) * Wp * Chp * 4 + 2 * cand * Wp * Cp * 4
        if fixed + tile <= vmem_budget:
            best = cand
    return best


def feedforward(x, p, *, inverse=False, matmul_dtype=jnp.bfloat16):
    """x: [B, H, W, C] (NHWC, matching the module's input). Returns [B, H, W, C] f32."""
    B, H, W, C = x.shape
    Ch = p["w1_t"].shape[1]
    Cp, Chp = _round_up(C, 128), _round_up(Ch, 128)          # lane-dense channels
    itemsize = jnp.dtype(matmul_dtype).itemsize

    Wp = _round_up(W + 2, 8)        # 1 zero col left, >=1 right (sublane alignment)
    TH = _pick_row_tile(H, Wp, Cp, Chp, itemsize)
    # For sub-32-bit input, keep the dynamic row-window start/size 16-aligned.
    if itemsize < 4 and ((TH * Wp) % 16 or ((TH + 2) * Wp) % 16):
        Wp = _round_up(W + 2, 16)
    n_row_tiles = H // TH
    row_align = 16 if (TH * Wp) % 16 == 0 else 8

    # Zero padding does triple duty: it realizes the depthwise padding=1 (a zero
    # pixel stays zero through 1x1-conv + GDN), aligns the padded width, and
    # pads channels to 128-multiples.  Shipped flat + in bf16 to halve HBM
    # traffic and avoid any in-kernel input reshape.
    xp = jnp.pad(x, ((0, 0), (1, 1), (1, Wp - W - 1), (0, Cp - C)))
    xp = xp.astype(matmul_dtype).reshape(B, (H + 2) * Wp, Cp)

    def pad2(a, shape, value=0.0):
        return jnp.pad(a, [(0, s - d) for d, s in zip(a.shape, shape)],
                       constant_values=value)

    w1 = pad2(p["w1_t"], (Cp, Chp)).astype(matmul_dtype)
    g1 = pad2(p["gamma1_t"], (Chp, Chp)).astype(matmul_dtype)
    g2 = pad2(p["gamma2_t"], (Chp, Chp)).astype(matmul_dtype)
    w3 = pad2(p["w3_t"], (Chp, Cp)).astype(matmul_dtype)
    b1 = pad2(p["beta1"], (1, Chp), value=1.0).astype(jnp.float32)  # pad=1 -> finite rsqrt
    b2 = pad2(p["beta2"], (1, Chp), value=1.0).astype(jnp.float32)
    dwk = pad2(p["dwk"], (9, Chp)).astype(jnp.float32)

    kern = functools.partial(_feedforward_kernel, TH=TH, W=W, Wp=Wp, Chp=Chp,
                             inverse=inverse, row_align=row_align)
    rep = lambda shape: pl.BlockSpec(shape, lambda b, t: (0,) * len(shape))

    out = pl.pallas_call(
        kern,
        out_shape=jax.ShapeDtypeStruct((B, H * W, Cp), jnp.float32),
        grid_spec=pltpu.PrefetchScalarGridSpec(
            num_scalar_prefetch=0,
            grid=(B, n_row_tiles),
            in_specs=[
                # Padded, flattened input: fetched once per batch element
                # (block index constant in t), sliced per row-tile in-kernel.
                pl.BlockSpec((None, (H + 2) * Wp, Cp), lambda b, t: (b, 0, 0)),
                rep((Cp, Chp)),      # w1^T
                rep((Chp, Chp)),     # gamma1^T
                rep((1, Chp)),       # beta1
                rep((9, Chp)),       # depthwise taps (dy*3+dx, ch)
                rep((Chp, Chp)),     # gamma2^T
                rep((1, Chp)),       # beta2
                rep((Chp, Cp)),      # w3^T
            ],
            out_specs=pl.BlockSpec((None, TH * W, Cp), lambda b, t: (b, t, 0)),
            scratch_shapes=[
                pltpu.VMEM((TH + 2, Wp, Chp), jnp.float32),  # a1 tile (+halo)
            ],
        ),
        compiler_params=pltpu.CompilerParams(
            dimension_semantics=("parallel", "parallel"),
            vmem_limit_bytes=48 * 1024 * 1024),              # < v7x 64 MiB physical
    )(xp, w1, g1, b1, dwk, g2, b2, w3)

    return out.reshape(B, H, W, Cp)[..., :C]


def make_params(key, dim, mult):
    ch = dim * mult
    ks = jax.random.split(key, 7)
    # PyTorch shapes: w1 [ch, dim, 1, 1], dw [ch, 1, 3, 3], w3 [dim, ch, 1, 1]
    w1 = jax.random.normal(ks[0], (ch, dim), jnp.float32) / jnp.sqrt(dim)
    w3 = jax.random.normal(ks[1], (dim, ch), jnp.float32) / jnp.sqrt(ch)
    dw = jax.random.normal(ks[2], (ch, 3, 3), jnp.float32) / 3.0
    beta1 = 1.0 + 0.1 * jax.random.uniform(ks[3], (ch,), jnp.float32)
    beta2 = 1.0 + 0.1 * jax.random.uniform(ks[4], (ch,), jnp.float32)
    gamma1 = 0.1 * jnp.eye(ch, dtype=jnp.float32) + \
        0.01 * jax.random.uniform(ks[5], (ch, ch), jnp.float32)
    gamma2 = 0.1 * jnp.eye(ch, dtype=jnp.float32) + \
        0.01 * jax.random.uniform(ks[6], (ch, ch), jnp.float32)
    return dict(
        w1_t=w1.T,                                           # [dim, ch]
        w3_t=w3.T,                                           # [ch, dim]
        dwk=jnp.transpose(dw, (1, 2, 0)).reshape(9, ch),     # [9, ch], tap dy*3+dx
        gamma1_t=gamma1.T, beta1=beta1.reshape(1, ch),
        gamma2_t=gamma2.T, beta2=beta2.reshape(1, ch),
    )


def feedforward_ref(x, p, *, inverse=False, matmul_dtype=jnp.bfloat16):
    """Pure-JAX reference with the same matmul precision (bf16 operands, f32 acc)."""
    B, H, W, C = x.shape
    Ch = p["w1_t"].shape[1]
    md = matmul_dtype

    def mm(a, b):
        return jnp.einsum('...k,kc->...c', a.astype(md), b.astype(md),
                          preferred_element_type=jnp.float32)

    def gdn(v, gamma_t, beta):
        s = mm(v * v, gamma_t) + beta.reshape(1, 1, 1, -1)
        return v * (jnp.sqrt(s) if inverse else jax.lax.rsqrt(s))

    h1 = mm(x, p["w1_t"])
    a1 = gdn(h1, p["gamma1_t"], p["beta1"])
    pad = jnp.pad(a1, ((0, 0), (1, 1), (1, 1), (0, 0)))
    dwk3 = p["dwk"].reshape(3, 3, Ch)
    h2 = jnp.zeros_like(a1)
    for dx in range(3):              # same accumulation order as the kernel
        for dy in range(3):
            h2 = h2 + pad[:, dy:dy + H, dx:dx + W, :] * dwk3[dy, dx]
    a2 = gdn(h2, p["gamma2_t"], p["beta2"])
    return mm(a2, p["w3_t"])


if __name__ == "__main__":
    B, H, W, dim, mult = 2, 16, 16, 4, 4
    key = jax.random.PRNGKey(0)
    kx, kp = jax.random.split(key)
    x = jax.random.normal(kx, (B, H, W, dim), jnp.float32)
    params = make_params(kp, dim, mult)

    for inv in (False, True):
        out = jax.block_until_ready(feedforward(x, params, inverse=inv))
        ref = jax.block_until_ready(
            feedforward_ref(x, params, inverse=inv, matmul_dtype=jnp.bfloat16))
        assert out.shape == (B, H, W, dim)
        err = float(jnp.max(jnp.abs(out - ref)))
        assert jnp.allclose(out, ref, rtol=5e-3, atol=5e-3), \
            f"inverse={inv}: max abs err {err}"

    print("KERNEL_OK")
</pallas_src>

<mosaic_0001>
module attributes {stable_mosaic.version = 11 : i64} {
  func.func @_feedforward_kernel(%arg0: i32, %arg1: i32, %arg2: memref<1x432x128xbf16, #tpu.memory_space<vmem>>, %arg3: memref<128x128xbf16, #tpu.memory_space<vmem>>, %arg4: memref<128x128xbf16, #tpu.memory_space<vmem>>, %arg5: memref<1x128xf32, #tpu.memory_space<vmem>>, %arg6: memref<9x128xf32, #tpu.memory_space<vmem>>, %arg7: memref<128x128xbf16, #tpu.memory_space<vmem>>, %arg8: memref<1x128xf32, #tpu.memory_space<vmem>>, %arg9: memref<128x128xbf16, #tpu.memory_space<vmem>>, %arg10: memref<1x128x128xf32, #tpu.memory_space<vmem>>, %arg11: memref<10x24x128xf32, #tpu.memory_space<vmem>>) attributes {dimension_semantics = [#tpu.dimension_semantics<parallel>, #tpu.dimension_semantics<parallel>], iteration_bounds = array<i64: 2, 2>, scalar_prefetch = 0 : i64, scratch_operands = 1 : i64, tpu.core_type = #tpu.core_type<tc>, window_params = [{transform_indices = @transform_0, window_bounds = array<i64: 1, 432, 128>}, {pipeline_mode = #tpu.pipeline_mode<synchronous>, transform_indices = @transform_1, window_bounds = array<i64: 128, 128>}, {pipeline_mode = #tpu.pipeline_mode<synchronous>, transform_indices = @transform_2, window_bounds = array<i64: 128, 128>}, {pipeline_mode = #tpu.pipeline_mode<synchronous>, transform_indices = @transform_3, window_bounds = array<i64: 1, 128>}, {pipeline_mode = #tpu.pipeline_mode<synchronous>, transform_indices = @transform_4, window_bounds = array<i64: 9, 128>}, {pipeline_mode = #tpu.pipeline_mode<synchronous>, transform_indices = @transform_5, window_bounds = array<i64: 128, 128>}, {pipeline_mode = #tpu.pipeline_mode<synchronous>, transform_indices = @transform_6, window_bounds = array<i64: 1, 128>}, {pipeline_mode = #tpu.pipeline_mode<synchronous>, transform_indices = @transform_7, window_bounds = array<i64: 128, 128>}, {transform_indices = @transform_8, window_bounds = array<i64: 1, 128, 128>}]} {
    %c192_i32 = arith.constant 192 : i32
    %0 = arith.muli %arg1, %c192_i32 : i32
    %1 = tpu.assume_multiple %0, 16 : i32
    %c0 = arith.constant 0 : index
    %2 = arith.index_cast %1 : i32 to index
    %c0_0 = arith.constant 0 : index
    %3 = vector.load %arg2[%c0, %2, %c0_0] : memref<1x432x128xbf16, #tpu.memory_space<vmem>>, vector<1x240x128xbf16>
    %4 = vector.shape_cast %3 : vector<1x240x128xbf16> to vector<240x128xbf16>
    %c0_1 = arith.constant 0 : index
    %c0_2 = arith.constant 0 : index
    %5 = vector.load %arg3[%c0_1, %c0_2] : memref<128x128xbf16, #tpu.memory_space<vmem>>, vector<128x128xbf16>
    %cst = arith.constant dense<0.000000e+00> : vector<240x128xf32>
    %6 = tpu.matmul %4, %5, %cst {dimension_numbers = #tpu.dot_dimension_numbers<[1], [0], [0], [1], [0, 0, 1, 1], [], []>} : vector<240x128xbf16>, vector<128x128xbf16>, vector<240x128xf32> -> vector<240x128xf32>
    %7 = arith.mulf %6, %6 : vector<240x128xf32>
    %8 = arith.truncf %7 : vector<240x128xf32> to vector<240x128xbf16>
    %c0_3 = arith.constant 0 : index
    %c0_4 = arith.constant 0 : index
    %9 = vector.load %arg4[%c0_3, %c0_4] : memref<128x128xbf16, #tpu.memory_space<vmem>>, vector<128x128xbf16>
    %cst_5 = arith.constant dense<0.000000e+00> : vector<240x128xf32>
    %10 = tpu.matmul %8, %9, %cst_5 {dimension_numbers = #tpu.dot_dimension_numbers<[1], [0], [0], [1], [0, 0, 1, 1], [], []>} : vector<240x128xbf16>, vector<128x128xbf16>, vector<240x128xf32> -> vector<240x128xf32>
    %c0_6 = arith.constant 0 : index
    %c0_7 = arith.constant 0 : index
    %11 = vector.load %arg5[%c0_6, %c0_7] : memref<1x128xf32, #tpu.memory_space<vmem>>, vector<1x128xf32>
    %12 = vector.broadcast %11 : vector<1x128xf32> to vector<240x128xf32>
    %13 = arith.addf %10, %12 : vector<240x128xf32>
    %14 = math.rsqrt %13 : vector<240x128xf32>
    %15 = arith.mulf %6, %14 : vector<240x128xf32>
    %16 = vector.shape_cast %15 : vector<240x128xf32> to vector<10x24x128xf32>
    %c0_8 = arith.constant 0 : index
    %c0_9 = arith.constant 0 : index
    %c0_10 = arith.constant 0 : index
    %17 = vector.load %arg11[%c0_8, %c0_9, %c0_10] : memref<10x24x128xf32, #tpu.memory_space<vmem>>, vector<10x24x128xf32>
    tpu.vector_store %arg11[%c0_8, %c0_9, %c0_10], %16 {strides = array<i32>} : memref<10x24x128xf32, #tpu.memory_space<vmem>>, vector<10x24x128xf32>,
    %c0_11 = arith.constant 0 : index
    %c0_12 = arith.constant 0 : index
    %18 = vector.load %arg6[%c0_11, %c0_12] : memref<9x128xf32, #tpu.memory_space<vmem>>, vector<9x128xf32>
    %19 = vector.extract_strided_slice %18 {offsets = [0, 0], sizes = [1, 128], strides = [1, 1]} : vector<9x128xf32> to vector<1x128xf32>
    %20 = vector.extract_strided_slice %18 {offsets = [1, 0], sizes = [1, 128], strides = [1, 1]} : vector<9x128xf32> to vector<1x128xf32>
    %21 = vector.extract_strided_slice %18 {offsets = [2, 0], sizes = [1, 128], strides = [1, 1]} : vector<9x128xf32> to vector<1x128xf32>
    %22 = vector.extract_strided_slice %18 {offsets = [3, 0], sizes = [1, 128], strides = [1, 1]} : vector<9x128xf32> to vector<1x128xf32>
    %23 = vector.extract_strided_slice %18 {offsets = [4, 0], sizes = [1, 128], strides = [1, 1]} : vector<9x128xf32> to vector<1x128xf32>
    %24 = vector.extract_strided_slice %18 {offsets = [5, 0], sizes = [1, 128], strides = [1, 1]} : vector<9x128xf32> to vector<1x128xf32>
    %25 = vector.extract_strided_slice %18 {offsets = [6, 0], sizes = [1, 128], strides = [1, 1]} : vector<9x128xf32> to vector<1x128xf32>
    %26 = vector.extract_strided_slice %18 {offsets = [7, 0], sizes = [1, 128], strides = [1, 1]} : vector<9x128xf32> to vector<1x128xf32>
    %27 = vector.extract_strided_slice %18 {offsets = [8, 0], sizes = [1, 128], strides = [1, 1]} : vector<9x128xf32> to vector<1x128xf32>
    %cst_13 = arith.constant 0.000000e+00 : f32
    %28 = vector.broadcast %cst_13 : f32 to vector<8x16x128xf32>
    %c0_14 = arith.constant 0 : index
    %c0_15 = arith.constant 0 : index
    %c0_16 = arith.constant 0 : index
    %29 = vector.load %arg11[%c0_14, %c0_15, %c0_16] : memref<10x24x128xf32, #tpu.memory_space<vmem>>, vector<10x16x128xf32>
    %30 = vector.extract_strided_slice %29 {offsets = [0, 0, 0], sizes = [8, 16, 128], strides = [1, 1, 1]} : vector<10x16x128xf32> to vector<8x16x128xf32>
    %31 = vector.shape_cast %19 : vector<1x128xf32> to vector<1x1x128xf32>
    %32 = vector.broadcast %31 : vector<1x1x128xf32> to vector<8x16x128xf32>
    %33 = arith.mulf %30, %32 : vector<8x16x128xf32>
    %34 = arith.addf %28, %33 : vector<8x16x128xf32>
    %35 = vector.extract_strided_slice %29 {offsets = [1, 0, 0], sizes = [8, 16, 128], strides = [1, 1, 1]} : vector<10x16x128xf32> to vector<8x16x128xf32>
    %36 = vector.shape_cast %22 : vector<1x128xf32> to vector<1x1x128xf32>
    %37 = vector.broadcast %36 : vector<1x1x128xf32> to vector<8x16x128xf32>
    %38 = arith.mulf %35, %37 : vector<8x16x128xf32>
    %39 = arith.addf %34, %38 : vector<8x16x128xf32>
    %40 = vector.extract_strided_slice %29 {offsets = [2, 0, 0], sizes = [8, 16, 128], strides = [1, 1, 1]} : vector<10x16x128xf32> to vector<8x16x128xf32>
    %41 = vector.shape_cast %25 : vector<1x128xf32> to vector<1x1x128xf32>
    %42 = vector.broadcast %41 : vector<1x1x128xf32> to vector<8x16x128xf32>
    %43 = arith.mulf %40, %42 : vector<8x16x128xf32>
    %44 = arith.addf %39, %43 : vector<8x16x128xf32>
    %c0_17 = arith.constant 0 : index
    %c1 = arith.constant 1 : index
    %c0_18 = arith.constant 0 : index
    %45 = vector.load %arg11[%c0_17, %c1, %c0_18] : memref<10x24x128xf32, #tpu.memory_space<vmem>>, vector<10x16x128xf32>
    %46 = vector.extract_strided_slice %45 {offsets = [0, 0, 0], sizes = [8, 16, 128], strides = [1, 1, 1]} : vector<10x16x128xf32> to vector<8x16x128xf32>
    %47 = vector.shape_cast %20 : vector<1x128xf32> to vector<1x1x128xf32>
    %48 = vector.broadcast %47 : vector<1x1x128xf32> to vector<8x16x128xf32>
    %49 = arith.mulf %46, %48 : vector<8x16x128xf32>
    %50 = arith.addf %44, %49 : vector<8x16x128xf32>
    %51 = vector.extract_strided_slice %45 {offsets = [1, 0, 0], sizes = [8, 16, 128], strides = [1, 1, 1]} : vector<10x16x128xf32> to vector<8x16x128xf32>
    %52 = vector.shape_cast %23 : vector<1x128xf32> to vector<1x1x128xf32>
    %53 = vector.broadcast %52 : vector<1x1x128xf32> to vector<8x16x128xf32>
    %54 = arith.mulf %51, %53 : vector<8x16x128xf32>
    %55 = arith.addf %50, %54 : vector<8x16x128xf32>
    %56 = vector.extract_strided_slice %45 {offsets = [2, 0, 0], sizes = [8, 16, 128], strides = [1, 1, 1]} : vector<10x16x128xf32> to vector<8x16x128xf32>
    %57 = vector.shape_cast %26 : vector<1x128xf32> to vector<1x1x128xf32>
    %58 = vector.broadcast %57 : vector<1x1x128xf32> to vector<8x16x128xf32>
    %59 = arith.mulf %56, %58 : vector<8x16x128xf32>
    %60 = arith.addf %55, %59 : vector<8x16x128xf32>
    %c0_19 = arith.constant 0 : index
    %c2 = arith.constant 2 : index
    %c0_20 = arith.constant 0 : index
    %61 = vector.load %arg11[%c0_19, %c2, %c0_20] : memref<10x24x128xf32, #tpu.memory_space<vmem>>, vector<10x16x128xf32>
    %62 = vector.extract_strided_slice %61 {offsets = [0, 0, 0], sizes = [8, 16, 128], strides = [1, 1, 1]} : vector<10x16x128xf32> to vector<8x16x128xf32>
    %63 = vector.shape_cast %21 : vector<1x128xf32> to vector<1x1x128xf32>
    %64 = vector.broadcast %63 : vector<1x1x128xf32> to vector<8x16x128xf32>
    %65 = arith.mulf %62, %64 : vector<8x16x128xf32>
    %66 = arith.addf %60, %65 : vector<8x16x128xf32>
    %67 = vector.extract_strided_slice %61 {offsets = [1, 0, 0], sizes = [8, 16, 128], strides = [1, 1, 1]} : vector<10x16x128xf32> to vector<8x16x128xf32>
    %68 = vector.shape_cast %24 : vector<1x128xf32> to vector<1x1x128xf32>
    %69 = vector.broadcast %68 : vector<1x1x128xf32> to vector<8x16x128xf32>
    %70 = arith.mulf %67, %69 : vector<8x16x128xf32>
    %71 = arith.addf %66, %70 : vector<8x16x128xf32>
    %72 = vector.extract_strided_slice %61 {offsets = [2, 0, 0], sizes = [8, 16, 128], strides = [1, 1, 1]} : vector<10x16x128xf32> to vector<8x16x128xf32>
    %73 = vector.shape_cast %27 : vector<1x128xf32> to vector<1x1x128xf32>
    %74 = vector.broadcast %73 : vector<1x1x128xf32> to vector<8x16x128xf32>
    %75 = arith.mulf %72, %74 : vector<8x16x128xf32>
    %76 = arith.addf %71, %75 : vector<8x16x128xf32>
    %77 = vector.shape_cast %76 : vector<8x16x128xf32> to vector<128x128xf32>
    %78 = arith.mulf %77, %77 : vector<128x128xf32>
    %79 = arith.truncf %78 : vector<128x128xf32> to vector<128x128xbf16>
    %c0_21 = arith.constant 0 : index
    %c0_22 = arith.constant 0 : index
    %80 = vector.load %arg7[%c0_21, %c0_22] : memref<128x128xbf16, #tpu.memory_space<vmem>>, vector<128x128xbf16>
    %cst_23 = arith.constant dense<0.000000e+00> : vector<128x128xf32>
    %81 = tpu.matmul %79, %80, %cst_23 {dimension_numbers = #tpu.dot_dimension_numbers<[1], [0], [0], [1], [0, 0, 1, 1], [], []>} : vector<128x128xbf16>, vector<128x128xbf16>, vector<128x128xf32> -> vector<128x128xf32>
    %c0_24 = arith.constant 0 : index
    %c0_25 = arith.constant 0 : index
    %82 = vector.load %arg8[%c0_24, %c0_25] : memref<1x128xf32, #tpu.memory_space<vmem>>, vector<1x128xf32>
    %83 = vector.broadcast %82 : vector<1x128xf32> to vector<128x128xf32>
    %84 = arith.addf %81, %83 : vector<128x128xf32>
    %85 = math.rsqrt %84 : vector<128x128xf32>
    %86 = arith.mulf %77, %85 : vector<128x128xf32>
    %87 = arith.truncf %86 : vector<128x128xf32> to vector<128x128xbf16>
    %c0_26 = arith.constant 0 : index
    %c0_27 = arith.constant 0 : index
    %88 = vector.load %arg9[%c0_26, %c0_27] : memref<128x128xbf16, #tpu.memory_space<vmem>>, vector<128x128xbf16>
    %cst_28 = arith.constant dense<0.000000e+00> : vector<128x128xf32>
    %89 = tpu.matmul %87, %88, %cst_28 {dimension_numbers = #tpu.dot_dimension_numbers<[1], [0], [0], [1], [0, 0, 1, 1], [], []>} : vector<128x128xbf16>, vector<128x128xbf16>, vector<128x128xf32> -> vector<128x128xf32>
    %c0_29 = arith.constant 0 : index
    %c0_30 = arith.constant 0 : index
    %c0_31 = arith.constant 0 : index
    %90 = vector.load %arg10[%c0_29, %c0_30, %c0_31] : memref<1x128x128xf32, #tpu.memory_space<vmem>>, vector<1x128x128xf32>
    %91 = vector.shape_cast %90 : vector<1x128x128xf32> to vector<128x128xf32>
    %92 = vector.shape_cast %89 : vector<128x128xf32> to vector<1x128x128xf32>
    tpu.vector_store %arg10[%c0_29, %c0_30, %c0_31], %92 {strides = array<i32>} : memref<1x128x128xf32, #tpu.memory_space<vmem>>, vector<1x128x128xf32>,
    return
  }
  func.func @transform_0(%arg0: i32, %arg1: i32) -> (i32, i32, i32) {
    %c0_i32 = arith.constant 0 : i32
    %c0_i32_0 = arith.constant 0 : i32
    %c0_i32_1 = arith.constant 0 : i32
    return %arg0, %c0_i32, %c0_i32_0 : i32, i32, i32
  }
  func.func @transform_1(%arg0: i32, %arg1: i32) -> (i32, i32) {
    %c0_i32 = arith.constant 0 : i32
    %c0_i32_0 = arith.constant 0 : i32
    %c0_i32_1 = arith.constant 0 : i32
    return %c0_i32, %c0_i32_0 : i32, i32
  }
  func.func @transform_2(%arg0: i32, %arg1: i32) -> (i32, i32) {
    %c0_i32 = arith.constant 0 : i32
    %c0_i32_0 = arith.constant 0 : i32
    %c0_i32_1 = arith.constant 0 : i32
    return %c0_i32, %c0_i32_0 : i32, i32
  }
  func.func @transform_3(%arg0: i32, %arg1: i32) -> (i32, i32) {
    %c0_i32 = arith.constant 0 : i32
    %c0_i32_0 = arith.constant 0 : i32
    %c0_i32_1 = arith.constant 0 : i32
    return %c0_i32, %c0_i32_0 : i32, i32
  }
  func.func @transform_4(%arg0: i32, %arg1: i32) -> (i32, i32) {
    %c0_i32 = arith.constant 0 : i32
    %c0_i32_0 = arith.constant 0 : i32
    %c0_i32_1 = arith.constant 0 : i32
    return %c0_i32, %c0_i32_0 : i32, i32
  }
  func.func @transform_5(%arg0: i32, %arg1: i32) -> (i32, i32) {
    %c0_i32 = arith.constant 0 : i32
    %c0_i32_0 = arith.constant 0 : i32
    %c0_i32_1 = arith.constant 0 : i32
    return %c0_i32, %c0_i32_0 : i32, i32
  }
  func.func @transform_6(%arg0: i32, %arg1: i32) -> (i32, i32) {
    %c0_i32 = arith.constant 0 : i32
    %c0_i32_0 = arith.constant 0 : i32
    %c0_i32_1 = arith.constant 0 : i32
    return %c0_i32, %c0_i32_0 : i32, i32
  }
  func.func @transform_7(%arg0: i32, %arg1: i32) -> (i32, i32) {
    %c0_i32 = arith.constant 0 : i32
    %c0_i32_0 = arith.constant 0 : i32
    %c0_i32_1 = arith.constant 0 : i32
    return %c0_i32, %c0_i32_0 : i32, i32
  }
  func.func @transform_8(%arg0: i32, %arg1: i32) -> (i32, i32, i32) {
    %c0_i32 = arith.constant 0 : i32
    %c0_i32_0 = arith.constant 0 : i32
    return %arg0, %arg1, %c0_i32 : i32, i32, i32
  }
}

</mosaic_0001>

<llo_original>
// kernel: tpu_custom_call.1
$region0: #{tpu_custom_call.1}
  #allocation0 [shape = 'u32[]', space=smem, size = 0x4, offset = 0x4, fixed_abs, tag = 'smem constant byte address 0x4 - core index']
  #allocation1 [shape = 'u32[72,128]{1,0:T(1,128)}', space=vmem, size = 0x9000, scoped, tag = 'internal scratch']
  #allocation2 [shape = 'f32[10,24,128]{2,1,0:T(8,128)}', space=vmem, size = 0x1e000, scoped, tag = 'scratch operand']
  %s0 = inlined_call_operand.hbm [shape: bf16[2,432,128], index: 0, kind: input, shape index: {}]
  %s1 = inlined_call_operand.hbm [shape: bf16[128,128], index: 1, kind: input, shape index: {}]
  %s2 = inlined_call_operand.hbm [shape: bf16[128,128], index: 2, kind: input, shape index: {}]
  %s3 = inlined_call_operand.vmem [shape: f32[1,128], index: 3, kind: input, shape index: {}]
  %s4 = inlined_call_operand.hbm [shape: f32[9,128], index: 4, kind: input, shape index: {}]
  %s5 = inlined_call_operand.hbm [shape: bf16[128,128], index: 5, kind: input, shape index: {}]
  %s6 = inlined_call_operand.vmem [shape: f32[1,128], index: 6, kind: input, shape index: {}]
  %s7 = inlined_call_operand.hbm [shape: bf16[128,128], index: 7, kind: input, shape index: {}]
  %s8 = inlined_call_operand.hbm [shape: f32[2,256,128], index: 8, kind: output, shape index: {}]
  %s9 = sld [smem:[#allocation0]]
  $region89: #{tpu_custom_call.1} parent=0
    _
  %s11 = ssub.s32 1, %s9
  %s12 = scalar_select 0, %s11, %s9
  $region1: #{tpu_custom_call.1} parent=0
    #allocation3 [shape = 'u8[221184]{0}', space=vmem, size = 0x36000, scoped, tag = 'input window, operand 0']
    #allocation4 [shape = 's32[2]{0}', space=sflag, size = 0x8, scoped, tag = 'scoped memory for tpu_custom_call.1']
    #allocation5 [shape = 's32[2]{0}', space=sflag, size = 0x8, scoped, tag = 'scoped memory for tpu_custom_call.1']
    #allocation6 [shape = 'u8[32768]{0}', space=vmem, size = 0x8000, scoped, tag = 'input window, operand 1, single buffered']
    #allocation7 [shape = 's32[1]{0}', space=sflag, size = 0x4, scoped, tag = 'scoped memory for tpu_custom_call.1']
    #allocation8 [shape = 'u8[32768]{0}', space=vmem, size = 0x8000, scoped, tag = 'input window, operand 2, single buffered']
    #allocation9 [shape = 'u8[8192]{0}', space=vmem, size = 0x2000, scoped, tag = 'input window, operand 4, single buffered']
    #allocation10 [shape = 's32[1]{0}', space=sflag, size = 0x4, scoped, tag = 'scoped memory for tpu_custom_call.1']
    #allocation11 [shape = 'u8[32768]{0}', space=vmem, size = 0x8000, scoped, tag = 'input window, operand 5, single buffered']
    #allocation12 [shape = 'u8[32768]{0}', space=vmem, size = 0x8000, scoped, tag = 'input window, operand 7, single buffered']
    #allocation13 [shape = 's32[1]{0}', space=sflag, size = 0x4, scoped, tag = 'scoped memory for tpu_custom_call.1']
    #allocation14 [shape = 'u8[131072]{0}', space=vmem, size = 0x20000, scoped, tag = 'output window, operand 0']
    %13 = vsyncpa [#allocation4], 0
    %s14 = scalar_lea.sflag [#allocation4], 1
    %15 = vsyncpa %s14, 0
    %16 = vsyncpa [#allocation7], 0
    %17 = vsyncpa [#allocation10], 0
    %18 = vsyncpa [#allocation13], 0
    %19 = vsyncpa [#allocation5], 0
    %s20 = scalar_lea.sflag [#allocation5], 1
    %21 = vsyncpa %s20, 0
    loop: start=0, step=1, limit=6
    $region2: #{tpu_custom_call.1} parent=1 // loop_pre_header
      _
    $region3: #{tpu_custom_call.1} parent=1 // loop_header
      %s23 = sphi 0, %s27
      %p24 = scmp.ge.s32.totalorder %s23, 6
      %s30 = sphi 0, %s42
      %s31 = sphi 0, %s38
      %s32 = sphi 0, %s30
      %s33 = sphi 0, %s31
      %s34 = sphi 0, %s32
      %s35 = sphi 0, %s33
      %s45 = sphi 0, %s47
      %s48 = sphi 0, %s45
      %s49 = sphi 0, %s48
      %s65 = sphi 0, %s49
      %s69 = sphi 0, %s69
      %s71 = sphi 0, %s69
      %s72 = sphi 0, %s71
      %s86 = sphi 0, %s72
      %s90 = sphi 0, %s90
      %s92 = sphi 0, %s90
      %s93 = sphi 0, %s92
      %s107 = sphi 0, %s93
      %s111 = sphi 0, %s111
      %s113 = sphi 0, %s111
      %s114 = sphi 0, %s113
      %s128 = sphi 0, %s114
      %s132 = sphi 0, %s132
      %s134 = sphi 0, %s132
      %s135 = sphi 0, %s134
      %s149 = sphi 0, %s135
      %s153 = sphi 0, %s153
      %s155 = sphi 0, %s153
      %s156 = sphi 0, %s155
      %s170 = sphi 0, %s156
      %s174 = sphi 0, %s174
      %s176 = sphi 0, %s174
      %s177 = sphi 0, %s176
      %s191 = sphi 0, %s177
      %s195 = sphi 0, %s195
      %s197 = sphi 0, %s195
      %s198 = sphi 0, %s197
      %s212 = sphi 0, %s198
      %s220 = sphi 0, %s222
      %s223 = sphi 0, %s220
      %s224 = sphi 0, %s223
      %s240 = sphi 0, %s224
    $region4: #{tpu_custom_call.1} parent=1 // loop_header_branch
      %26 = sbr.rel (%p24) target = $region8
    $region5: #{tpu_custom_call.1} parent=1 // loop_body
      %s28 = ssub.s32 %s23, 1
      %s29 = ssub.s32 %s23, 2
      %s36 = sadd.s32 1, %s31
      %p37 = scmp.ge.s32.totalorder %s36, 2
      %s38 = scalar_select %p37, 0, %s36
      %s39 = sadd.s32 1, %s30
      %s40 = scalar_select %p37, %s39, %s30
      %p41 = scmp.ge.s32.totalorder %s40, 2
      %s42 = scalar_select %p41, 0, %s40
      %s43 = ssub.s32 %s30, %s42
      %p44 = scmp.eq.s32.totalorder %s43, 0
      %s46 = sadd.s32 %s45, 1
      %s47 = scalar_select %p44, %s45, %s46
      %p50 = pneg %p44
      %p51 = scmp.eq.s32.totalorder %s23, 3
      %p52 = por %p50, %p51
      %p53 = scmp.ne.s32.totalorder %s45, %s48
      %p54 = scmp.eq.s32.totalorder %s23, 0
      %p55 = por %p53, %p54
      %p56 = scmp.ne.s32.totalorder %s45, %s48
      %p57 = scmp.eq.s32.totalorder %s28, 3
      %p58 = por %p56, %p57
      %p59 = scmp.ne.s32.totalorder %s48, %s49
      %p60 = scmp.eq.s32.totalorder %s28, 0
      %p61 = por %p59, %p60
      %p62 = scmp.ne.s32.totalorder %s48, %s49
      %p63 = scmp.eq.s32.totalorder %s29, 3
      %p64 = por %p62, %p63
      %p66 = scmp.ne.s32.totalorder %s49, %s65
      %p67 = scmp.eq.s32.totalorder %s29, 0
      %p68 = por %p66, %p67
      %s70 = sadd.s32 %s69, 1
      %p73 = scmp.eq.s32.totalorder %s23, 3
      %p74 = scmp.ne.s32.totalorder %s69, %s71
      %p75 = scmp.eq.s32.totalorder %s23, 0
      %p76 = por %p74, %p75
      %p77 = scmp.ne.s32.totalorder %s69, %s71
      %p78 = scmp.eq.s32.totalorder %s28, 3
      %p79 = por %p77, %p78
      %p80 = scmp.ne.s32.totalorder %s71, %s72
      %p81 = scmp.eq.s32.totalorder %s28, 0
      %p82 = por %p80, %p81
      %p83 = scmp.ne.s32.totalorder %s71, %s72
      %p84 = scmp.eq.s32.totalorder %s29, 3
      %p85 = por %p83, %p84
      %p87 = scmp.ne.s32.totalorder %s72, %s86
      %p88 = scmp.eq.s32.totalorder %s29, 0
      %p89 = por %p87, %p88
      %s91 = sadd.s32 %s90, 1
      %p94 = scmp.eq.s32.totalorder %s23, 3
      %p95 = scmp.ne.s32.totalorder %s90, %s92
      %p96 = scmp.eq.s32.totalorder %s23, 0
      %p97 = por %p95, %p96
      %p98 = scmp.ne.s32.totalorder %s90, %s92
      %p99 = scmp.eq.s32.totalorder %s28, 3
      %p100 = por %p98, %p99
      %p101 = scmp.ne.s32.totalorder %s92, %s93
      %p102 = scmp.eq.s32.totalorder %s28, 0
      %p103 = por %p101, %p102
      %p104 = scmp.ne.s32.totalorder %s92, %s93
      %p105 = scmp.eq.s32.totalorder %s29, 3
      %p106 = por %p104, %p105
      %p108 = scmp.ne.s32.totalorder %s93, %s107
      %p109 = scmp.eq.s32.totalorder %s29, 0
      %p110 = por %p108, %p109
      %s112 = sadd.s32 %s111, 1
      %p115 = scmp.eq.s32.totalorder %s23, 3
      %p116 = scmp.ne.s32.totalorder %s111, %s113
      %p117 = scmp.eq.s32.totalorder %s23, 0
      %p118 = por %p116, %p117
      %p119 = scmp.ne.s32.totalorder %s111, %s113
      %p120 = scmp.eq.s32.totalorder %s28, 3
      %p121 = por %p119, %p120
      %p122 = scmp.ne.s32.totalorder %s113, %s114
      %p123 = scmp.eq.s32.totalorder %s28, 0
      %p124 = por %p122, %p123
      %p125 = scmp.ne.s32.totalorder %s113, %s114
      %p126 = scmp.eq.s32.totalorder %s29, 3
      %p127 = por %p125, %p126
      %p129 = scmp.ne.s32.totalorder %s114, %s128
      %p130 = scmp.eq.s32.totalorder %s29, 0
      %p131 = por %p129, %p130
      %s133 = sadd.s32 %s132, 1
      %p136 = scmp.eq.s32.totalorder %s23, 3
      %p137 = scmp.ne.s32.totalorder %s132, %s134
      %p138 = scmp.eq.s32.totalorder %s23, 0
      %p139 = por %p137, %p138
      %p140 = scmp.ne.s32.totalorder %s132, %s134
      %p141 = scmp.eq.s32.totalorder %s28, 3
      %p142 = por %p140, %p141
      %p143 = scmp.ne.s32.totalorder %s134, %s135
      %p144 = scmp.eq.s32.totalorder %s28, 0
      %p145 = por %p143, %p144
      %p146 = scmp.ne.s32.totalorder %s134, %s135
      %p147 = scmp.eq.s32.totalorder %s29, 3
      %p148 = por %p146, %p147
      %p150 = scmp.ne.s32.totalorder %s135, %s149
      %p151 = scmp.eq.s32.totalorder %s29, 0
      %p152 = por %p150, %p151
      %s154 = sadd.s32 %s153, 1
      %p157 = scmp.eq.s32.totalorder %s23, 3
      %p158 = scmp.ne.s32.totalorder %s153, %s155
      %p159 = scmp.eq.s32.totalorder %s23, 0
      %p160 = por %p158, %p159
      %p161 = scmp.ne.s32.totalorder %s153, %s155
      %p162 = scmp.eq.s32.totalorder %s28, 3
      %p163 = por %p161, %p162
      %p164 = scmp.ne.s32.totalorder %s155, %s156
      %p165 = scmp.eq.s32.totalorder %s28, 0
      %p166 = por %p164, %p165
      %p167 = scmp.ne.s32.totalorder %s155, %s156
      %p168 = scmp.eq.s32.totalorder %s29, 3
      %p169 = por %p167, %p168
      %p171 = scmp.ne.s32.totalorder %s156, %s170
      %p172 = scmp.eq.s32.totalorder %s29, 0
      %p173 = por %p171, %p172
      %s175 = sadd.s32 %s174, 1
      %p178 = scmp.eq.s32.totalorder %s23, 3
      %p179 = scmp.ne.s32.totalorder %s174, %s176
      %p180 = scmp.eq.s32.totalorder %s23, 0
      %p181 = por %p179, %p180
      %p182 = scmp.ne.s32.totalorder %s174, %s176
      %p183 = scmp.eq.s32.totalorder %s28, 3
      %p184 = por %p182, %p183
      %p185 = scmp.ne.s32.totalorder %s176, %s177
      %p186 = scmp.eq.s32.totalorder %s28, 0
      %p187 = por %p185, %p186
      %p188 = scmp.ne.s32.totalorder %s176, %s177
      %p189 = scmp.eq.s32.totalorder %s29, 3
      %p190 = por %p188, %p189
      %p192 = scmp.ne.s32.totalorder %s177, %s191
      %p193 = scmp.eq.s32.totalorder %s29, 0
      %p194 = por %p192, %p193
      %s196 = sadd.s32 %s195, 1
      %p199 = scmp.eq.s32.totalorder %s23, 3
      %p200 = scmp.ne.s32.totalorder %s195, %s197
      %p201 = scmp.eq.s32.totalorder %s23, 0
      %p202 = por %p200, %p201
      %p203 = scmp.ne.s32.totalorder %s195, %s197
      %p204 = scmp.eq.s32.totalorder %s28, 3
      %p205 = por %p203, %p204
      %p206 = scmp.ne.s32.totalorder %s197, %s198
      %p207 = scmp.eq.s32.totalorder %s28, 0
      %p208 = por %p206, %p207
      %p209 = scmp.ne.s32.totalorder %s197, %s198
      %p210 = scmp.eq.s32.totalorder %s29, 3
      %p211 = por %p209, %p210
      %p213 = scmp.ne.s32.totalorder %s198, %s212
      %p214 = scmp.eq.s32.totalorder %s29, 0
      %p215 = por %p213, %p214
      %s216 = ssub.s32 %s30, %s42
      %s217 = ssub.s32 %s31, %s38
      %s218 = sor.u32 %s216, %s217
      %p219 = scmp.eq.s32.totalorder %s218, 0
      %s221 = sadd.s32 %s220, 1
      %s222 = scalar_select %p219, %s220, %s221
      %p225 = pneg %p219
      %p226 = scmp.eq.s32.totalorder %s23, 3
      %p227 = por %p225, %p226
      %p228 = scmp.ne.s32.totalorder %s220, %s223
      %p229 = scmp.eq.s32.totalorder %s23, 0
      %p230 = por %p228, %p229
      %p231 = scmp.ne.s32.totalorder %s220, %s223
      %p232 = scmp.eq.s32.totalorder %s28, 3
      %p233 = por %p231, %p232
      %p234 = scmp.ne.s32.totalorder %s223, %s224
      %p235 = scmp.eq.s32.totalorder %s28, 0
      %p236 = por %p234, %p235
      %p237 = scmp.ne.s32.totalorder %s223, %s224
      %p238 = scmp.eq.s32.totalorder %s29, 3
      %p239 = por %p237, %p238
      %p241 = scmp.ne.s32.totalorder %s224, %s240
      %p242 = scmp.eq.s32.totalorder %s29, 0
      %p243 = por %p241, %p242
      %p244 = scmp.le.s32.totalorder 1, %s23
      %p245 = scmp.lt.s32.totalorder %s23, 5
      %p246 = pnand %p244, %p245
      %p247 = pneg %p246
      // Predicated region
      $region9: #{tpu_custom_call.1} parent=5 // pred_check
        _
      $region10: #{tpu_custom_call.1} parent=5 // pred_check_branch
        %249 = sbr.rel (%p246) target = $region12
      $region11: #{tpu_custom_call.1} parent=5 // pred_region
        %s250 = ssub.s32 %s23, 1
        // Predicated region
        $region13: #{tpu_custom_call.1} parent=11 // pred_check
          %p251 = pneg %p82
        $region14: #{tpu_custom_call.1} parent=11 // pred_check_branch
          %253 = sbr.rel (%p251) target = $region16
        $region15: #{tpu_custom_call.1} parent=11 // pred_region
          %255 = vsyncadd [#allocation7], 0
          %s256 = sshll.u32 %s1, 4
          %s257 = int_to_ptr.hbm [resolvable:$true] %s256
          %s258 = sshll.u32 [#allocation6], 4
          %s259 = int_to_ptr.vmem [resolvable:$true] %s258
          %264 = dma.hbm_to_vmem [thread:$0]  %s257, 1024, %s259, [#allocation7], 64, 64, 4
        $region16: #{tpu_custom_call.1} parent=11 // pred_fallthru
          _
        // Predicated region
        $region17: #{tpu_custom_call.1} parent=11 // pred_check
          %p265 = pneg %p103
        $region18: #{tpu_custom_call.1} parent=11 // pred_check_branch
          %267 = sbr.rel (%p265) target = $region20
        $region19: #{tpu_custom_call.1} parent=11 // pred_region
          %269 = vsyncadd [#allocation7], 0
          %s270 = sshll.u32 %s2, 4
          %s271 = int_to_ptr.hbm [resolvable:$true] %s270
          %s272 = sshll.u32 [#allocation8], 4
          %s273 = int_to_ptr.vmem [resolvable:$true] %s272
          %278 = dma.hbm_to_vmem [thread:$0]  %s271, 1024, %s273, [#allocation7], 64, 64, 4
        $region20: #{tpu_custom_call.1} parent=11 // pred_fallthru
          _
        // Predicated region
        $region21: #{tpu_custom_call.1} parent=11 // pred_check
          %p279 = pneg %p124
        $region22: #{tpu_custom_call.1} parent=11 // pred_check_branch
          %281 = sbr.rel (%p279) target = $region24
        $region23: #{tpu_custom_call.1} parent=11 // pred_region
          _
        $region24: #{tpu_custom_call.1} parent=11 // pred_fallthru
          _
        // Predicated region
        $region25: #{tpu_custom_call.1} parent=11 // pred_check
          %p282 = pneg %p145
        $region26: #{tpu_custom_call.1} parent=11 // pred_check_branch
          %284 = sbr.rel (%p282) target = $region28
        $region27: #{tpu_custom_call.1} parent=11 // pred_region
          %286 = vsyncadd [#allocation10], 0
          %s287 = sshll.u32 %s4, 4
          %s288 = int_to_ptr.hbm [resolvable:$true] %s287
          %s289 = sshll.u32 [#allocation9], 4
          %s290 = int_to_ptr.vmem [resolvable:$true] %s289
          %295 = dma.hbm_to_vmem [thread:$0]  %s288, 256, %s290, [#allocation10], 128, 128, 8
        $region28: #{tpu_custom_call.1} parent=11 // pred_fallthru
          _
        // Predicated region
        $region29: #{tpu_custom_call.1} parent=11 // pred_check
          %p296 = pneg %p166
        $region30: #{tpu_custom_call.1} parent=11 // pred_check_branch
          %298 = sbr.rel (%p296) target = $region32
        $region31: #{tpu_custom_call.1} parent=11 // pred_region
          %300 = vsyncadd [#allocation10], 0
          %s301 = sshll.u32 %s5, 4
          %s302 = int_to_ptr.hbm [resolvable:$true] %s301
          %s303 = sshll.u32 [#allocation11], 4
          %s304 = int_to_ptr.vmem [resolvable:$true] %s303
          %309 = dma.hbm_to_vmem [thread:$0]  %s302, 1024, %s304, [#allocation10], 64, 64, 4
        $region32: #{tpu_custom_call.1} parent=11 // pred_fallthru
          _
        // Predicated region
        $region33: #{tpu_custom_call.1} parent=11 // pred_check
          %p310 = pneg %p187
        $region34: #{tpu_custom_call.1} parent=11 // pred_check_branch
          %312 = sbr.rel (%p310) target = $region36
        $region35: #{tpu_custom_call.1} parent=11 // pred_region
          _
        $region36: #{tpu_custom_call.1} parent=11 // pred_fallthru
          _
        // Predicated region
        $region37: #{tpu_custom_call.1} parent=11 // pred_check
          %p313 = pneg %p208
        $region38: #{tpu_custom_call.1} parent=11 // pred_check_branch
          %315 = sbr.rel (%p313) target = $region40
        $region39: #{tpu_custom_call.1} parent=11 // pred_region
          %317 = vsyncadd [#allocation13], 0
          %s318 = sshll.u32 %s7, 4
          %s319 = int_to_ptr.hbm [resolvable:$true] %s318
          %s320 = sshll.u32 [#allocation12], 4
          %s321 = int_to_ptr.vmem [resolvable:$true] %s320
          %326 = dma.hbm_to_vmem [thread:$0]  %s319, 1024, %s321, [#allocation13], 64, 64, 4
        $region40: #{tpu_custom_call.1} parent=11 // pred_fallthru
          _
      $region12: #{tpu_custom_call.1} parent=5 // pred_fallthru
        _
      %p327 = scmp.lt.s32.totalorder %s23, 4
      // Predicated region
      $region41: #{tpu_custom_call.1} parent=5 // pred_check
        %p328 = pneg %p327
      $region42: #{tpu_custom_call.1} parent=5 // pred_check_branch
        %330 = sbr.rel (%p328) target = $region44
      $region43: #{tpu_custom_call.1} parent=5 // pred_region
        // Predicated region
        $region45: #{tpu_custom_call.1} parent=43 // pred_check
          %p331 = pneg %p55
        $region46: #{tpu_custom_call.1} parent=43 // pred_check_branch
          %333 = sbr.rel (%p331) target = $region48
        $region47: #{tpu_custom_call.1} parent=43 // pred_region
          %s334 = sand.u32 %s45, 1
          %s335 = scalar_lea.sflag [#allocation4], %s334
          %s336 = sand.u32 %s45, 1
          %s337 = smul.addr %s336, 216
          %s338 = scalar_lea.vmem [#allocation3], %s337
          %340 = vsyncadd %s335, 0
          %s341 = smul.addr %s30, 54
          %s342 = smul.addr %s341, 4
          %s343 = scalar_lea.hbm %s0, %s342
          %s344 = sshll.u32 %s343, 4
          %s345 = int_to_ptr.hbm [resolvable:$true] %s344
          %s346 = sshll.u32 %s338, 4
          %s347 = int_to_ptr.vmem [resolvable:$true] %s346
          %352 = dma.hbm_to_vmem [thread:$0]  %s345, 3456, %s347, %s335, 64, 64, 4
        $region48: #{tpu_custom_call.1} parent=43 // pred_fallthru
          _
      $region44: #{tpu_custom_call.1} parent=5 // pred_fallthru
        _
      %p353 = scmp.le.s32.totalorder 1, %s23
      %p354 = scmp.lt.s32.totalorder %s23, 5
      %p355 = pnand %p353, %p354
      %p356 = pneg %p355
      // Predicated region
      $region49: #{tpu_custom_call.1} parent=5 // pred_check
        _
      $region50: #{tpu_custom_call.1} parent=5 // pred_check_branch
        %358 = sbr.rel (%p355) target = $region52
      $region51: #{tpu_custom_call.1} parent=5 // pred_region
        %s359 = ssub.s32 %s23, 1
        %s360 = sand.u32 %s48, 1
        %s361 = scalar_lea.sflag [#allocation4], %s360
        %s362 = sand.u32 %s48, 1
        %s363 = smul.addr %s362, 216
        %s364 = scalar_lea.vmem [#allocation3], %s363
        // Predicated region
        $region53: #{tpu_custom_call.1} parent=51 // pred_check
          %p365 = pneg %p61
        $region54: #{tpu_custom_call.1} parent=51 // pred_check_branch
          %367 = sbr.rel (%p365) target = $region56
        $region55: #{tpu_custom_call.1} parent=51 // pred_region
          %369 = dma.done %s361, 3456
        $region56: #{tpu_custom_call.1} parent=51 // pred_fallthru
          _
        // Predicated region
        $region57: #{tpu_custom_call.1} parent=51 // pred_check
          %p370 = pneg %p82
        $region58: #{tpu_custom_call.1} parent=51 // pred_check_branch
          %372 = sbr.rel (%p370) target = $region60
        $region59: #{tpu_custom_call.1} parent=51 // pred_region
          %374 = dma.done [#allocation7], 1024
        $region60: #{tpu_custom_call.1} parent=51 // pred_fallthru
          _
        // Predicated region
        $region61: #{tpu_custom_call.1} parent=51 // pred_check
          %p375 = pneg %p103
        $region62: #{tpu_custom_call.1} parent=51 // pred_check_branch
          %377 = sbr.rel (%p375) target = $region64
        $region63: #{tpu_custom_call.1} parent=51 // pred_region
          %379 = dma.done [#allocation7], 1024
        $region64: #{tpu_custom_call.1} parent=51 // pred_fallthru
          _
        // Predicated region
        $region65: #{tpu_custom_call.1} parent=51 // pred_check
          %p380 = pneg %p145
        $region66: #{tpu_custom_call.1} parent=51 // pred_check_branch
          %382 = sbr.rel (%p380) target = $region68
        $region67: #{tpu_custom_call.1} parent=51 // pred_region
          %384 = dma.done [#allocation10], 256
        $region68: #{tpu_custom_call.1} parent=51 // pred_fallthru
          _
        // Predicated region
        $region69: #{tpu_custom_call.1} parent=51 // pred_check
          %p385 = pneg %p166
        $region70: #{tpu_custom_call.1} parent=51 // pred_check_branch
          %387 = sbr.rel (%p385) target = $region72
        $region71: #{tpu_custom_call.1} parent=51 // pred_region
          %389 = dma.done [#allocation10], 1024
        $region72: #{tpu_custom_call.1} parent=51 // pred_fallthru
          _
        // Predicated region
        $region73: #{tpu_custom_call.1} parent=51 // pred_check
          %p390 = pneg %p208
        $region74: #{tpu_custom_call.1} parent=51 // pred_check_branch
          %392 = sbr.rel (%p390) target = $region76
        $region75: #{tpu_custom_call.1} parent=51 // pred_region
          %394 = dma.done [#allocation13], 1024
        $region76: #{tpu_custom_call.1} parent=51 // pred_fallthru
          _
        %s395 = sand.u32 %s48, 1
        %s396 = scalar_lea.sflag [#allocation4], %s395
        %s397 = sand.u32 %s48, 1
        %s398 = smul.addr %s397, 216
        %s399 = scalar_lea.vmem [#allocation3], %s398
        %p400 = pneg %p61
        %p401 = pneg %p58
        %p402 = pneg %p82
        %p403 = pneg %p79
        %p404 = pneg %p103
        %p405 = pneg %p100
        %p406 = pneg %p124
        %p407 = pneg %p121
        %p408 = pneg %p145
        %p409 = pneg %p142
        %p410 = pneg %p166
        %p411 = pneg %p163
        %p412 = pneg %p187
        %p413 = pneg %p184
        %p414 = pneg %p208
        %p415 = pneg %p205
        %p416 = pneg %p236
        %p417 = pneg %p233
        %s418 = sand.u32 %s223, 1
        %s419 = scalar_lea.sflag [#allocation5], %s418
        %s420 = sand.u32 %s223, 1
        %s421 = smul.addr %s420, 128
        %s422 = scalar_lea.vmem [#allocation14], %s421
        %s423 = smul.u32 16, %s33
        %s424 = smul.u32 %s33, 192
        %s425 = sshra.s32 %s424, 3
        %s426 = sand.u32 %s424, 7
        %s427 = smul.addr %s425, 4
        %s428 = scalar_lea.vmem %s364, %s427 [#allocation3]
        %v429 = vld [vmem:[%s428] sm:$0xf]
        %v430 = vld [vmem:[%s428 + $0x4] sm:$0xf]
        %v431 = vld [vmem:[%s428 + $0x8] sm:$0xf]
        %v432 = vld [vmem:[%s428 + $0xc] sm:$0xf]
        %v433 = vld [vmem:[%s428 + $0x10] sm:$0xf]
        %v434 = vld [vmem:[%s428 + $0x14] sm:$0xf]
        %v435 = vld [vmem:[%s428 + $0x18] sm:$0xf]
        %v436 = vld [vmem:[%s428 + $0x1c] sm:$0xf]
        %v437 = vld [vmem:[%s428 + $0x20] sm:$0xf]
        %v438 = vld [vmem:[%s428 + $0x24] sm:$0xf]
        %v439 = vld [vmem:[%s428 + $0x28] sm:$0xf]
        %v440 = vld [vmem:[%s428 + $0x2c] sm:$0xf]
        %v441 = vld [vmem:[%s428 + $0x30] sm:$0xf]
        %v442 = vld [vmem:[%s428 + $0x34] sm:$0xf]
        %v443 = vld [vmem:[%s428 + $0x38] sm:$0xf]
        %v444 = vld [vmem:[%s428 + $0x3c] sm:$0xf]
        %v445 = vld [vmem:[%s428 + $0x40] sm:$0xf]
        %v446 = vld [vmem:[%s428 + $0x44] sm:$0xf]
        %v447 = vld [vmem:[%s428 + $0x48] sm:$0xf]
        %v448 = vld [vmem:[%s428 + $0x4c] sm:$0xf]
        %v449 = vld [vmem:[%s428 + $0x50] sm:$0xf]
        %v450 = vld [vmem:[%s428 + $0x54] sm:$0xf]
        %v451 = vld [vmem:[%s428 + $0x58] sm:$0xf]
        %v452 = vld [vmem:[%s428 + $0x5c] sm:$0xf]
        %v453 = vld [vmem:[%s428 + $0x60] sm:$0xf]
        %v454 = vld [vmem:[%s428 + $0x64] sm:$0xf]
        %v455 = vld [vmem:[%s428 + $0x68] sm:$0xf]
        %v456 = vld [vmem:[%s428 + $0x6c] sm:$0xf]
        %v457 = vld [vmem:[%s428 + $0x70] sm:$0xf]
        %v458 = vld [vmem:[%s428 + $0x74] sm:$0xf]
        %v459 = vld [vmem:[#allocation6] sm:$0xf]
        %v460 = vld [vmem:[#allocation6 + $0x4] sm:$0xf]
        %v461 = vld [vmem:[#allocation6 + $0x8] sm:$0xf]
        %v462 = vld [vmem:[#allocation6 + $0xc] sm:$0xf]
        %v463 = vld [vmem:[#allocation6 + $0x10] sm:$0xf]
        %v464 = vld [vmem:[#allocation6 + $0x14] sm:$0xf]
        %v465 = vld [vmem:[#allocation6 + $0x18] sm:$0xf]
        %v466 = vld [vmem:[#allocation6 + $0x1c] sm:$0xf]
        %v467 = vld [vmem:[#allocation6 + $0x20] sm:$0xf]
        %v468 = vld [vmem:[#allocation6 + $0x24] sm:$0xf]
        %v469 = vld [vmem:[#allocation6 + $0x28] sm:$0xf]
        %v470 = vld [vmem:[#allocation6 + $0x2c] sm:$0xf]
        %v471 = vld [vmem:[#allocation6 + $0x30] sm:$0xf]
        %v472 = vld [vmem:[#allocation6 + $0x34] sm:$0xf]
        %v473 = vld [vmem:[#allocation6 + $0x38] sm:$0xf]
        %v474 = vld [vmem:[#allocation6 + $0x3c] sm:$0xf]
        %v505 = vunpack.c.l.b16 %v429
        %v506 = vunpack.c.l.b16 %v430
        %v507 = vunpack.c.l.b16 %v431
        %v508 = vunpack.c.l.b16 %v432
        %v509 = vunpack.c.l.b16 %v433
        %v510 = vunpack.c.l.b16 %v434
        %v511 = vunpack.c.l.b16 %v435
        %v512 = vunpack.c.l.b16 %v436
        %v513 = vunpack.c.l.b16 %v437
        %v514 = vunpack.c.l.b16 %v438
        %v515 = vunpack.c.l.b16 %v439
        %v516 = vunpack.c.l.b16 %v440
        %v517 = vunpack.c.l.b16 %v441
        %v518 = vunpack.c.l.b16 %v442
        %v519 = vunpack.c.l.b16 %v443
        %v520 = vunpack.c.l.b16 %v444
        %v521 = vunpack.c.l.b16 %v445
        %v522 = vunpack.c.l.b16 %v446
        %v523 = vunpack.c.l.b16 %v447
        %v524 = vunpack.c.l.b16 %v448
        %v525 = vunpack.c.l.b16 %v449
        %v526 = vunpack.c.l.b16 %v450
        %v527 = vunpack.c.l.b16 %v451
        %v528 = vunpack.c.l.b16 %v452
        %v529 = vunpack.c.l.b16 %v453
        %v530 = vunpack.c.l.b16 %v454
        %v531 = vunpack.c.l.b16 %v455
        %v532 = vunpack.c.l.b16 %v456
        %v533 = vunpack.c.l.b16 %v457
        %v534 = vunpack.c.l.b16 %v458
        %v535 = vpack.c.b16 %v506, %v505
        %v536 = vpack.c.b16 %v508, %v507
        %v537 = vpack.c.b16 %v510, %v509
        %v538 = vpack.c.b16 %v512, %v511
        %v539 = vpack.c.b16 %v514, %v513
        %v540 = vpack.c.b16 %v516, %v515
        %v541 = vpack.c.b16 %v518, %v517
        %v542 = vpack.c.b16 %v520, %v519
        %v543 = vpack.c.b16 %v522, %v521
        %v544 = vpack.c.b16 %v524, %v523
        %v545 = vpack.c.b16 %v526, %v525
        %v546 = vpack.c.b16 %v528, %v527
        %v547 = vpack.c.b16 %v530, %v529
        %v548 = vpack.c.b16 %v532, %v531
        %v549 = vpack.c.b16 %v534, %v533
        %v581 = vunpack.c.l.b16 %v459
        %v582 = vunpack.c.l.b16 %v460
        %v583 = vunpack.c.l.b16 %v461
        %v584 = vunpack.c.l.b16 %v462
        %v585 = vunpack.c.l.b16 %v463
        %v586 = vunpack.c.l.b16 %v464
        %v587 = vunpack.c.l.b16 %v465
        %v588 = vunpack.c.l.b16 %v466
        %v589 = vunpack.c.l.b16 %v467
        %v590 = vunpack.c.l.b16 %v468
        %v591 = vunpack.c.l.b16 %v469
        %v592 = vunpack.c.l.b16 %v470
        %v593 = vunpack.c.l.b16 %v471
        %v594 = vunpack.c.l.b16 %v472
        %v595 = vunpack.c.l.b16 %v473
        %v596 = vunpack.c.l.b16 %v474
        %v597 = vpack.c.b16 %v582, %v581
        %v598 = vpack.c.b16 %v584, %v583
        %v599 = vpack.c.b16 %v586, %v585
        %v600 = vpack.c.b16 %v588, %v587
        %v601 = vpack.c.b16 %v590, %v589
        %v602 = vpack.c.b16 %v592, %v591
        %v603 = vpack.c.b16 %v594, %v593
        %v604 = vpack.c.b16 %v596, %v595
        %613 = vmatpush.bf16.msra.mxu0 %v604
        %614 = vmatpush.bf16.msra.mxu0 %v603
        %615 = vmatpush.bf16.msra.mxu0 %v602
        %616 = vmatpush.bf16.msra.mxu0 %v601
        %617 = vmatpush.bf16.msra.mxu0 %v600
        %618 = vmatpush.bf16.msra.mxu0 %v599
        %619 = vmatpush.bf16.msra.mxu0 %v598
        %620 = vmatpush.bf16.msra.mxu0 %v597
        %621 = vmatmul.bf16.gmra.mxu0 %v535
        %v622 = vpop.f32.mrf.mxu0
        %v623 = vadd.f32 0.0, %v622
        %v624 = vpop.f32.mrf.mxu0
        %v625 = vadd.f32 0.0, %v624
        %626 = vmatmul.bf16.gmra.mxu0 %v536
        %v627 = vpop.f32.mrf.mxu0
        %v628 = vadd.f32 0.0, %v627
        %v629 = vpop.f32.mrf.mxu0
        %v630 = vadd.f32 0.0, %v629
        %631 = vmatmul.bf16.gmra.mxu0 %v537
        %v632 = vpop.f32.mrf.mxu0
        %v633 = vadd.f32 0.0, %v632
        %v634 = vpop.f32.mrf.mxu0
        %v635 = vadd.f32 0.0, %v634
        %636 = vmatmul.bf16.gmra.mxu0 %v538
        %v637 = vpop.f32.mrf.mxu0
        %v638 = vadd.f32 0.0, %v637
        %v639 = vpop.f32.mrf.mxu0
        %v640 = vadd.f32 0.0, %v639
        %641 = vmatmul.bf16.gmra.mxu0 %v539
        %v642 = vpop.f32.mrf.mxu0
        %v643 = vadd.f32 0.0, %v642
        %v644 = vpop.f32.mrf.mxu0
        %v645 = vadd.f32 0.0, %v644
        %646 = vmatmul.bf16.gmra.mxu0 %v540
        %v647 = vpop.f32.mrf.mxu0
        %v648 = vadd.f32 0.0, %v647
        %v649 = vpop.f32.mrf.mxu0
        %v650 = vadd.f32 0.0, %v649
        %651 = vmatmul.bf16.gmra.mxu0 %v541
        %v652 = vpop.f32.mrf.mxu0
        %v653 = vadd.f32 0.0, %v652
        %v654 = vpop.f32.mrf.mxu0
        %v655 = vadd.f32 0.0, %v654
        %656 = vmatmul.bf16.gmra.mxu0 %v542
        %v657 = vpop.f32.mrf.mxu0
        %v658 = vadd.f32 0.0, %v657
        %v659 = vpop.f32.mrf.mxu0
        %v660 = vadd.f32 0.0, %v659
        %661 = vmatmul.bf16.gmra.mxu0 %v543
        %v662 = vpop.f32.mrf.mxu0
        %v663 = vadd.f32 0.0, %v662
        %v664 = vpop.f32.mrf.mxu0
        %v665 = vadd.f32 0.0, %v664
        %666 = vmatmul.bf16.gmra.mxu0 %v544
        %v667 = vpop.f32.mrf.mxu0
        %v668 = vadd.f32 0.0, %v667
        %v669 = vpop.f32.mrf.mxu0
        %v670 = vadd.f32 0.0, %v669
        %671 = vmatmul.bf16.gmra.mxu0 %v545
        %v672 = vpop.f32.mrf.mxu0
        %v673 = vadd.f32 0.0, %v672
        %v674 = vpop.f32.mrf.mxu0
        %v675 = vadd.f32 0.0, %v674
        %676 = vmatmul.bf16.gmra.mxu0 %v546
        %v677 = vpop.f32.mrf.mxu0
        %v678 = vadd.f32 0.0, %v677
        %v679 = vpop.f32.mrf.mxu0
        %v680 = vadd.f32 0.0, %v679
        %681 = vmatmul.bf16.gmra.mxu0 %v547
        %v682 = vpop.f32.mrf.mxu0
        %v683 = vadd.f32 0.0, %v682
        %v684 = vpop.f32.mrf.mxu0
        %v685 = vadd.f32 0.0, %v684
        %686 = vmatmul.bf16.gmra.mxu0 %v548
        %v687 = vpop.f32.mrf.mxu0
        %v688 = vadd.f32 0.0, %v687
        %v689 = vpop.f32.mrf.mxu0
        %v690 = vadd.f32 0.0, %v689
        %691 = vmatmul.bf16.gmra.mxu0 %v549
        %v692 = vpop.f32.mrf.mxu0
        %v693 = vadd.f32 0.0, %v692
        %v694 = vpop.f32.mrf.mxu0
        %v695 = vadd.f32 0.0, %v694
        %696 = vdwg.mxu0
        %v697 = vmul.f32 %v623, %v623
        %v698 = vmul.f32 %v625, %v625
        %v699 = vmul.f32 %v628, %v628
        %v700 = vmul.f32 %v630, %v630
        %v701 = vmul.f32 %v633, %v633
        %v702 = vmul.f32 %v635, %v635
        %v703 = vmul.f32 %v638, %v638
        %v704 = vmul.f32 %v640, %v640
        %v705 = vmul.f32 %v643, %v643
        %v706 = vmul.f32 %v645, %v645
        %v707 = vmul.f32 %v648, %v648
        %v708 = vmul.f32 %v650, %v650
        %v709 = vmul.f32 %v653, %v653
        %v710 = vmul.f32 %v655, %v655
        %v711 = vmul.f32 %v658, %v658
        %v712 = vmul.f32 %v660, %v660
        %v713 = vmul.f32 %v663, %v663
        %v714 = vmul.f32 %v665, %v665
        %v715 = vmul.f32 %v668, %v668
        %v716 = vmul.f32 %v670, %v670
        %v717 = vmul.f32 %v673, %v673
        %v718 = vmul.f32 %v675, %v675
        %v719 = vmul.f32 %v678, %v678
        %v720 = vmul.f32 %v680, %v680
        %v721 = vmul.f32 %v683, %v683
        %v722 = vmul.f32 %v685, %v685
        %v723 = vmul.f32 %v688, %v688
        %v724 = vmul.f32 %v690, %v690
        %v725 = vmul.f32 %v693, %v693
        %v726 = vmul.f32 %v695, %v695
        %v727 = vpack.c.bf16 %v698, %v697
        %v728 = vpack.c.bf16 %v700, %v699
        %v729 = vpack.c.bf16 %v702, %v701
        %v730 = vpack.c.bf16 %v704, %v703
        %v731 = vpack.c.bf16 %v706, %v705
        %v732 = vpack.c.bf16 %v708, %v707
        %v733 = vpack.c.bf16 %v710, %v709
        %v734 = vpack.c.bf16 %v712, %v711
        %v735 = vpack.c.bf16 %v714, %v713
        %v736 = vpack.c.bf16 %v716, %v715
        %v737 = vpack.c.bf16 %v718, %v717
        %v738 = vpack.c.bf16 %v720, %v719
        %v739 = vpack.c.bf16 %v722, %v721
        %v740 = vpack.c.bf16 %v724, %v723
        %v741 = vpack.c.bf16 %v726, %v725
        %v742 = vld [vmem:[#allocation8] sm:$0xf]
        %v743 = vld [vmem:[#allocation8 + $0x4] sm:$0xf]
        %v744 = vld [vmem:[#allocation8 + $0x8] sm:$0xf]
        %v745 = vld [vmem:[#allocation8 + $0xc] sm:$0xf]
        %v746 = vld [vmem:[#allocation8 + $0x10] sm:$0xf]
        %v747 = vld [vmem:[#allocation8 + $0x14] sm:$0xf]
        %v748 = vld [vmem:[#allocation8 + $0x18] sm:$0xf]
        %v749 = vld [vmem:[#allocation8 + $0x1c] sm:$0xf]
        %v750 = vld [vmem:[#allocation8 + $0x20] sm:$0xf]
        %v751 = vld [vmem:[#allocation8 + $0x24] sm:$0xf]
        %v752 = vld [vmem:[#allocation8 + $0x28] sm:$0xf]
        %v753 = vld [vmem:[#allocation8 + $0x2c] sm:$0xf]
        %v754 = vld [vmem:[#allocation8 + $0x30] sm:$0xf]
        %v755 = vld [vmem:[#allocation8 + $0x34] sm:$0xf]
        %v756 = vld [vmem:[#allocation8 + $0x38] sm:$0xf]
        %v757 = vld [vmem:[#allocation8 + $0x3c] sm:$0xf]
        %v758 = vld [vmem:[%s3] sm:$0x1]
        %v760 = vperm.slane %v758, 0
        %v778 = vunpack.c.l.b16 %v742
        %v779 = vunpack.c.l.b16 %v743
        %v780 = vunpack.c.l.b16 %v744
        %v781 = vunpack.c.l.b16 %v745
        %v782 = vunpack.c.l.b16 %v746
        %v783 = vunpack.c.l.b16 %v747
        %v784 = vunpack.c.l.b16 %v748
        %v785 = vunpack.c.l.b16 %v749
        %v786 = vunpack.c.l.b16 %v750
        %v787 = vunpack.c.l.b16 %v751
        %v788 = vunpack.c.l.b16 %v752
        %v789 = vunpack.c.l.b16 %v753
        %v790 = vunpack.c.l.b16 %v754
        %v791 = vunpack.c.l.b16 %v755
        %v792 = vunpack.c.l.b16 %v756
        %v793 = vunpack.c.l.b16 %v757
        %v794 = vpack.c.b16 %v779, %v778
        %v795 = vpack.c.b16 %v781, %v780
        %v796 = vpack.c.b16 %v783, %v782
        %v797 = vpack.c.b16 %v785, %v784
        %v798 = vpack.c.b16 %v787, %v786
        %v799 = vpack.c.b16 %v789, %v788
        %v800 = vpack.c.b16 %v791, %v790
        %v801 = vpack.c.b16 %v793, %v792
        %810 = vmatpush.bf16.msra.mxu0 %v801
        %811 = vmatpush.bf16.msra.mxu0 %v800
        %812 = vmatpush.bf16.msra.mxu0 %v799
        %813 = vmatpush.bf16.msra.mxu0 %v798
        %814 = vmatpush.bf16.msra.mxu0 %v797
        %815 = vmatpush.bf16.msra.mxu0 %v796
        %816 = vmatpush.bf16.msra.mxu0 %v795
        %817 = vmatpush.bf16.msra.mxu0 %v794
        %818 = vmatmul.bf16.gmra.mxu0 %v727
        %v819 = vpop.f32.mrf.mxu0
        %v820 = vadd.f32 %v760, %v819
        %v821 = vpop.f32.mrf.mxu0
        %v822 = vadd.f32 %v760, %v821
        %823 = vmatmul.bf16.gmra.mxu0 %v728
        %v824 = vpop.f32.mrf.mxu0
        %v825 = vadd.f32 %v760, %v824
        %v826 = vpop.f32.mrf.mxu0
        %v827 = vadd.f32 %v760, %v826
        %828 = vmatmul.bf16.gmra.mxu0 %v729
        %v829 = vpop.f32.mrf.mxu0
        %v830 = vadd.f32 %v760, %v829
        %v831 = vpop.f32.mrf.mxu0
        %v832 = vadd.f32 %v760, %v831
        %833 = vmatmul.bf16.gmra.mxu0 %v730
        %v834 = vpop.f32.mrf.mxu0
        %v835 = vadd.f32 %v760, %v834
        %v836 = vpop.f32.mrf.mxu0
        %v837 = vadd.f32 %v760, %v836
        %838 = vmatmul.bf16.gmra.mxu0 %v731
        %v839 = vpop.f32.mrf.mxu0
        %v840 = vadd.f32 %v760, %v839
        %v841 = vpop.f32.mrf.mxu0
        %v842 = vadd.f32 %v760, %v841
        %843 = vmatmul.bf16.gmra.mxu0 %v732
        %v844 = vpop.f32.mrf.mxu0
        %v845 = vadd.f32 %v760, %v844
        %v846 = vpop.f32.mrf.mxu0
        %v847 = vadd.f32 %v760, %v846
        %848 = vmatmul.bf16.gmra.mxu0 %v733
        %v849 = vpop.f32.mrf.mxu0
        %v850 = vadd.f32 %v760, %v849
        %v851 = vpop.f32.mrf.mxu0
        %v852 = vadd.f32 %v760, %v851
        %853 = vmatmul.bf16.gmra.mxu0 %v734
        %v854 = vpop.f32.mrf.mxu0
        %v855 = vadd.f32 %v760, %v854
        %v856 = vpop.f32.mrf.mxu0
        %v857 = vadd.f32 %v760, %v856
        %858 = vmatmul.bf16.gmra.mxu0 %v735
        %v859 = vpop.f32.mrf.mxu0
        %v860 = vadd.f32 %v760, %v859
        %v861 = vpop.f32.mrf.mxu0
        %v862 = vadd.f32 %v760, %v861
        %863 = vmatmul.bf16.gmra.mxu0 %v736
        %v864 = vpop.f32.mrf.mxu0
        %v865 = vadd.f32 %v760, %v864
        %v866 = vpop.f32.mrf.mxu0
        %v867 = vadd.f32 %v760, %v866
        %868 = vmatmul.bf16.gmra.mxu0 %v737
        %v869 = vpop.f32.mrf.mxu0
        %v870 = vadd.f32 %v760, %v869
        %v871 = vpop.f32.mrf.mxu0
        %v872 = vadd.f32 %v760, %v871
        %873 = vmatmul.bf16.gmra.mxu0 %v738
        %v874 = vpop.f32.mrf.mxu0
        %v875 = vadd.f32 %v760, %v874
        %v876 = vpop.f32.mrf.mxu0
        %v877 = vadd.f32 %v760, %v876
        %878 = vmatmul.bf16.gmra.mxu0 %v739
        %v879 = vpop.f32.mrf.mxu0
        %v880 = vadd.f32 %v760, %v879
        %v881 = vpop.f32.mrf.mxu0
        %v882 = vadd.f32 %v760, %v881
        %883 = vmatmul.bf16.gmra.mxu0 %v740
        %v884 = vpop.f32.mrf.mxu0
        %v885 = vadd.f32 %v760, %v884
        %v886 = vpop.f32.mrf.mxu0
        %v887 = vadd.f32 %v760, %v886
        %888 = vmatmul.bf16.gmra.mxu0 %v741
        %v889 = vpop.f32.mrf.mxu0
        %v890 = vadd.f32 %v760, %v889
        %v891 = vpop.f32.mrf.mxu0
        %v892 = vadd.f32 %v760, %v891
        %893 = vdwg.mxu0
        %v894 = vrsqrt.pop %v820
        %v895 = vmul.f32 %v894, %v820
        %v896 = vmul.f32 %v895, %v894
        %v897 = vmul.f32 0.5, %v896
        %v898 = vsub.f32 1.5, %v897
        %v899 = vmul.f32 %v894, %v898
        %vm900 = vweird.f32 %v820
        %vm901 = vweird.f32 %v894
        %vm902 = vmor %vm900, %vm901
        %v903 = vsel %vm902, %v894, %v899
        %v904 = vrsqrt.pop %v822
        %v905 = vmul.f32 %v904, %v822
        %v906 = vmul.f32 %v905, %v904
        %v907 = vmul.f32 0.5, %v906
        %v908 = vsub.f32 1.5, %v907
        %v909 = vmul.f32 %v904, %v908
        %vm910 = vweird.f32 %v822
        %vm911 = vweird.f32 %v904
        %vm912 = vmor %vm910, %vm911
        %v913 = vsel %vm912, %v904, %v909
        %v914 = vrsqrt.pop %v825
        %v915 = vmul.f32 %v914, %v825
        %v916 = vmul.f32 %v915, %v914
        %v917 = vmul.f32 0.5, %v916
        %v918 = vsub.f32 1.5, %v917
        %v919 = vmul.f32 %v914, %v918
        %vm920 = vweird.f32 %v825
        %vm921 = vweird.f32 %v914
        %vm922 = vmor %vm920, %vm921
        %v923 = vsel %vm922, %v914, %v919
        %v924 = vrsqrt.pop %v827
        %v925 = vmul.f32 %v924, %v827
        %v926 = vmul.f32 %v925, %v924
        %v927 = vmul.f32 0.5, %v926
        %v928 = vsub.f32 1.5, %v927
        %v929 = vmul.f32 %v924, %v928
        %vm930 = vweird.f32 %v827
        %vm931 = vweird.f32 %v924
        %vm932 = vmor %vm930, %vm931
        %v933 = vsel %vm932, %v924, %v929
        %v934 = vrsqrt.pop %v830
        %v935 = vmul.f32 %v934, %v830
        %v936 = vmul.f32 %v935, %v934
        %v937 = vmul.f32 0.5, %v936
        %v938 = vsub.f32 1.5, %v937
        %v939 = vmul.f32 %v934, %v938
        %vm940 = vweird.f32 %v830
        %vm941 = vweird.f32 %v934
        %vm942 = vmor %vm940, %vm941
        %v943 = vsel %vm942, %v934, %v939
        %v944 = vrsqrt.pop %v832
        %v945 = vmul.f32 %v944, %v832
        %v946 = vmul.f32 %v945, %v944
        %v947 = vmul.f32 0.5, %v946
        %v948 = vsub.f32 1.5, %v947
        %v949 = vmul.f32 %v944, %v948
        %vm950 = vweird.f32 %v832
        %vm951 = vweird.f32 %v944
        %vm952 = vmor %vm950, %vm951
        %v953 = vsel %vm952, %v944, %v949
        %v954 = vrsqrt.pop %v835
        %v955 = vmul.f32 %v954, %v835
        %v956 = vmul.f32 %v955, %v954
        %v957 = vmul.f32 0.5, %v956
        %v958 = vsub.f32 1.5, %v957
        %v959 = vmul.f32 %v954, %v958
        %vm960 = vweird.f32 %v835
        %vm961 = vweird.f32 %v954
        %vm962 = vmor %vm960, %vm961
        %v963 = vsel %vm962, %v954, %v959
        %v964 = vrsqrt.pop %v837
        %v965 = vmul.f32 %v964, %v837
        %v966 = vmul.f32 %v965, %v964
        %v967 = vmul.f32 0.5, %v966
        %v968 = vsub.f32 1.5, %v967
        %v969 = vmul.f32 %v964, %v968
        %vm970 = vweird.f32 %v837
        %vm971 = vweird.f32 %v964
        %vm972 = vmor %vm970, %vm971
        %v973 = vsel %vm972, %v964, %v969
        %v974 = vrsqrt.pop %v840
        %v975 = vmul.f32 %v974, %v840
        %v976 = vmul.f32 %v975, %v974
        %v977 = vmul.f32 0.5, %v976
        %v978 = vsub.f32 1.5, %v977
        %v979 = vmul.f32 %v974, %v978
        %vm980 = vweird.f32 %v840
        %vm981 = vweird.f32 %v974
        %vm982 = vmor %vm980, %vm981
        %v983 = vsel %vm982, %v974, %v979
        %v984 = vrsqrt.pop %v842
        %v985 = vmul.f32 %v984, %v842
        %v986 = vmul.f32 %v985, %v984
        %v987 = vmul.f32 0.5, %v986
        %v988 = vsub.f32 1.5, %v987
        %v989 = vmul.f32 %v984, %v988
        %vm990 = vweird.f32 %v842
        %vm991 = vweird.f32 %v984
        %vm992 = vmor %vm990, %vm991
        %v993 = vsel %vm992, %v984, %v989
        %v994 = vrsqrt.pop %v845
        %v995 = vmul.f32 %v994, %v845
        %v996 = vmul.f32 %v995, %v994
        %v997 = vmul.f32 0.5, %v996
        %v998 = vsub.f32 1.5, %v997
        %v999 = vmul.f32 %v994, %v998
        %vm1000 = vweird.f32 %v845
        %vm1001 = vweird.f32 %v994
        %vm1002 = vmor %vm1000, %vm1001
        %v1003 = vsel %vm1002, %v994, %v999
        %v1004 = vrsqrt.pop %v847
        %v1005 = vmul.f32 %v1004, %v847
        %v1006 = vmul.f32 %v1005, %v1004
        %v1007 = vmul.f32 0.5, %v1006
        %v1008 = vsub.f32 1.5, %v1007
        %v1009 = vmul.f32 %v1004, %v1008
        %vm1010 = vweird.f32 %v847
        %vm1011 = vweird.f32 %v1004
        %vm1012 = vmor %vm1010, %vm1011
        %v1013 = vsel %vm1012, %v1004, %v1009
        %v1014 = vrsqrt.pop %v850
        %v1015 = vmul.f32 %v1014, %v850
        %v1016 = vmul.f32 %v1015, %v1014
        %v1017 = vmul.f32 0.5, %v1016
        %v1018 = vsub.f32 1.5, %v1017
        %v1019 = vmul.f32 %v1014, %v1018
        %vm1020 = vweird.f32 %v850
        %vm1021 = vweird.f32 %v1014
        %vm1022 = vmor %vm1020, %vm1021
        %v1023 = vsel %vm1022, %v1014, %v1019
        %v1024 = vrsqrt.pop %v852
        %v1025 = vmul.f32 %v1024, %v852
        %v1026 = vmul.f32 %v1025, %v1024
        %v1027 = vmul.f32 0.5, %v1026
        %v1028 = vsub.f32 1.5, %v1027
        %v1029 = vmul.f32 %v1024, %v1028
        %vm1030 = vweird.f32 %v852
        %vm1031 = vweird.f32 %v1024
        %vm1032 = vmor %vm1030, %vm1031
        %v1033 = vsel %vm1032, %v1024, %v1029
        %v1034 = vrsqrt.pop %v855
        %v1035 = vmul.f32 %v1034, %v855
        %v1036 = vmul.f32 %v1035, %v1034
        %v1037 = vmul.f32 0.5, %v1036
        %v1038 = vsub.f32 1.5, %v1037
        %v1039 = vmul.f32 %v1034, %v1038
        %vm1040 = vweird.f32 %v855
        %vm1041 = vweird.f32 %v1034
        %vm1042 = vmor %vm1040, %vm1041
        %v1043 = vsel %vm1042, %v1034, %v1039
        %v1044 = vrsqrt.pop %v857
        %v1045 = vmul.f32 %v1044, %v857
        %v1046 = vmul.f32 %v1045, %v1044
        %v1047 = vmul.f32 0.5, %v1046
        %v1048 = vsub.f32 1.5, %v1047
        %v1049 = vmul.f32 %v1044, %v1048
        %vm1050 = vweird.f32 %v857
        %vm1051 = vweird.f32 %v1044
        %vm1052 = vmor %vm1050, %vm1051
        %v1053 = vsel %vm1052, %v1044, %v1049
        %v1054 = vrsqrt.pop %v860
        %v1055 = vmul.f32 %v1054, %v860
        %v1056 = vmul.f32 %v1055, %v1054
        %v1057 = vmul.f32 0.5, %v1056
        %v1058 = vsub.f32 1.5, %v1057
        %v1059 = vmul.f32 %v1054, %v1058
        %vm1060 = vweird.f32 %v860
        %vm1061 = vweird.f32 %v1054
        %vm1062 = vmor %vm1060, %vm1061
        %v1063 = vsel %vm1062, %v1054, %v1059
        %v1064 = vrsqrt.pop %v862
        %v1065 = vmul.f32 %v1064, %v862
        %v1066 = vmul.f32 %v1065, %v1064
        %v1067 = vmul.f32 0.5, %v1066
        %v1068 = vsub.f32 1.5, %v1067
        %v1069 = vmul.f32 %v1064, %v1068
        %vm1070 = vweird.f32 %v862
        %vm1071 = vweird.f32 %v1064
        %vm1072 = vmor %vm1070, %vm1071
        %v1073 = vsel %vm1072, %v1064, %v1069
        %v1074 = vrsqrt.pop %v865
        %v1075 = vmul.f32 %v1074, %v865
        %v1076 = vmul.f32 %v1075, %v1074
        %v1077 = vmul.f32 0.5, %v1076
        %v1078 = vsub.f32 1.5, %v1077
        %v1079 = vmul.f32 %v1074, %v1078
        %vm1080 = vweird.f32 %v865
        %vm1081 = vweird.f32 %v1074
        %vm1082 = vmor %vm1080, %vm1081
        %v1083 = vsel %vm1082, %v1074, %v1079
        %v1084 = vrsqrt.pop %v867
        %v1085 = vmul.f32 %v1084, %v867
        %v1086 = vmul.f32 %v1085, %v1084
        %v1087 = vmul.f32 0.5, %v1086
        %v1088 = vsub.f32 1.5, %v1087
        %v1089 = vmul.f32 %v1084, %v1088
        %vm1090 = vweird.f32 %v867
        %vm1091 = vweird.f32 %v1084
        %vm1092 = vmor %vm1090, %vm1091
        %v1093 = vsel %vm1092, %v1084, %v1089
        %v1094 = vrsqrt.pop %v870
        %v1095 = vmul.f32 %v1094, %v870
        %v1096 = vmul.f32 %v1095, %v1094
        %v1097 = vmul.f32 0.5, %v1096
        %v1098 = vsub.f32 1.5, %v1097
        %v1099 = vmul.f32 %v1094, %v1098
        %vm1100 = vweird.f32 %v870
        %vm1101 = vweird.f32 %v1094
        %vm1102 = vmor %vm1100, %vm1101
        %v1103 = vsel %vm1102, %v1094, %v1099
        %v1104 = vrsqrt.pop %v872
        %v1105 = vmul.f32 %v1104, %v872
        %v1106 = vmul.f32 %v1105, %v1104
        %v1107 = vmul.f32 0.5, %v1106
        %v1108 = vsub.f32 1.5, %v1107
        %v1109 = vmul.f32 %v1104, %v1108
        %vm1110 = vweird.f32 %v872
        %vm1111 = vweird.f32 %v1104
        %vm1112 = vmor %vm1110, %vm1111
        %v1113 = vsel %vm1112, %v1104, %v1109
        %v1114 = vrsqrt.pop %v875
        %v1115 = vmul.f32 %v1114, %v875
        %v1116 = vmul.f32 %v1115, %v1114
        %v1117 = vmul.f32 0.5, %v1116
        %v1118 = vsub.f32 1.5, %v1117
        %v1119 = vmul.f32 %v1114, %v1118
        %vm1120 = vweird.f32 %v875
        %vm1121 = vweird.f32 %v1114
        %vm1122 = vmor %vm1120, %vm1121
        %v1123 = vsel %vm1122, %v1114, %v1119
        %v1124 = vrsqrt.pop %v877
        %v1125 = vmul.f32 %v1124, %v877
        %v1126 = vmul.f32 %v1125, %v1124
        %v1127 = vmul.f32 0.5, %v1126
        %v1128 = vsub.f32 1.5, %v1127
        %v1129 = vmul.f32 %v1124, %v1128
        %vm1130 = vweird.f32 %v877
        %vm1131 = vweird.f32 %v1124
        %vm1132 = vmor %vm1130, %vm1131
        %v1133 = vsel %vm1132, %v1124, %v1129
        %v1134 = vrsqrt.pop %v880
        %v1135 = vmul.f32 %v1134, %v880
        %v1136 = vmul.f32 %v1135, %v1134
        %v1137 = vmul.f32 0.5, %v1136
        %v1138 = vsub.f32 1.5, %v1137
        %v1139 = vmul.f32 %v1134, %v1138
        %vm1140 = vweird.f32 %v880
        %vm1141 = vweird.f32 %v1134
        %vm1142 = vmor %vm1140, %vm1141
        %v1143 = vsel %vm1142, %v1134, %v1139
        %v1144 = vrsqrt.pop %v882
        %v1145 = vmul.f32 %v1144, %v882
        %v1146 = vmul.f32 %v1145, %v1144
        %v1147 = vmul.f32 0.5, %v1146
        %v1148 = vsub.f32 1.5, %v1147
        %v1149 = vmul.f32 %v1144, %v1148
        %vm1150 = vweird.f32 %v882
        %vm1151 = vweird.f32 %v1144
        %vm1152 = vmor %vm1150, %vm1151
        %v1153 = vsel %vm1152, %v1144, %v1149
        %v1154 = vrsqrt.pop %v885
        %v1155 = vmul.f32 %v1154, %v885
        %v1156 = vmul.f32 %v1155, %v1154
        %v1157 = vmul.f32 0.5, %v1156
        %v1158 = vsub.f32 1.5, %v1157
        %v1159 = vmul.f32 %v1154, %v1158
        %vm1160 = vweird.f32 %v885
        %vm1161 = vweird.f32 %v1154
        %vm1162 = vmor %vm1160, %vm1161
        %v1163 = vsel %vm1162, %v1154, %v1159
        %v1164 = vrsqrt.pop %v887
        %v1165 = vmul.f32 %v1164, %v887
        %v1166 = vmul.f32 %v1165, %v1164
        %v1167 = vmul.f32 0.5, %v1166
        %v1168 = vsub.f32 1.5, %v1167
        %v1169 = vmul.f32 %v1164, %v1168
        %vm1170 = vweird.f32 %v887
        %vm1171 = vweird.f32 %v1164
        %vm1172 = vmor %vm1170, %vm1171
        %v1173 = vsel %vm1172, %v1164, %v1169
        %v1174 = vrsqrt.pop %v890
        %v1175 = vmul.f32 %v1174, %v890
        %v1176 = vmul.f32 %v1175, %v1174
        %v1177 = vmul.f32 0.5, %v1176
        %v1178 = vsub.f32 1.5, %v1177
        %v1179 = vmul.f32 %v1174, %v1178
        %vm1180 = vweird.f32 %v890
        %vm1181 = vweird.f32 %v1174
        %vm1182 = vmor %vm1180, %vm1181
        %v1183 = vsel %vm1182, %v1174, %v1179
        %v1184 = vrsqrt.pop %v892
        %v1185 = vmul.f32 %v1184, %v892
        %v1186 = vmul.f32 %v1185, %v1184
        %v1187 = vmul.f32 0.5, %v1186
        %v1188 = vsub.f32 1.5, %v1187
        %v1189 = vmul.f32 %v1184, %v1188
        %vm1190 = vweird.f32 %v892
        %vm1191 = vweird.f32 %v1184
        %vm1192 = vmor %vm1190, %vm1191
        %v1193 = vsel %vm1192, %v1184, %v1189
        %v1194 = vmul.f32 %v623, %v903
        %v1195 = vmul.f32 %v625, %v913
        %v1196 = vmul.f32 %v628, %v923
        %v1197 = vmul.f32 %v630, %v933
        %v1198 = vmul.f32 %v633, %v943
        %v1199 = vmul.f32 %v635, %v953
        %v1200 = vmul.f32 %v638, %v963
        %v1201 = vmul.f32 %v640, %v973
        %v1202 = vmul.f32 %v643, %v983
        %v1203 = vmul.f32 %v645, %v993
        %v1204 = vmul.f32 %v648, %v1003
        %v1205 = vmul.f32 %v650, %v1013
        %v1206 = vmul.f32 %v653, %v1023
        %v1207 = vmul.f32 %v655, %v1033
        %v1208 = vmul.f32 %v658, %v1043
        %v1209 = vmul.f32 %v660, %v1053
        %v1210 = vmul.f32 %v663, %v1063
        %v1211 = vmul.f32 %v665, %v1073
        %v1212 = vmul.f32 %v668, %v1083
        %v1213 = vmul.f32 %v670, %v1093
        %v1214 = vmul.f32 %v673, %v1103
        %v1215 = vmul.f32 %v675, %v1113
        %v1216 = vmul.f32 %v678, %v1123
        %v1217 = vmul.f32 %v680, %v1133
        %v1218 = vmul.f32 %v683, %v1143
        %v1219 = vmul.f32 %v685, %v1153
        %v1220 = vmul.f32 %v688, %v1163
        %v1221 = vmul.f32 %v690, %v1173
        %v1222 = vmul.f32 %v693, %v1183
        %v1223 = vmul.f32 %v695, %v1193
        %1224 = vst [vmem:[#allocation2] sm:$0xff] %v1194
        %1225 = vst [vmem:[#allocation2 + $0x8] sm:$0xff] %v1195
        %1226 = vst [vmem:[#allocation2 + $0x10] sm:$0xff] %v1196
        %1227 = vst [vmem:[#allocation2 + $0x18] sm:$0xff] %v1197
        %1228 = vst [vmem:[#allocation2 + $0x20] sm:$0xff] %v1198
        %1229 = vst [vmem:[#allocation2 + $0x28] sm:$0xff] %v1199
        %1230 = vst [vmem:[#allocation2 + $0x30] sm:$0xff] %v1200
        %1231 = vst [vmem:[#allocation2 + $0x38] sm:$0xff] %v1201
        %1232 = vst [vmem:[#allocation2 + $0x40] sm:$0xff] %v1202
        %1233 = vst [vmem:[#allocation2 + $0x48] sm:$0xff] %v1203
        %1234 = vst [vmem:[#allocation2 + $0x50] sm:$0xff] %v1204
        %1235 = vst [vmem:[#allocation2 + $0x58] sm:$0xff] %v1205
        %1236 = vst [vmem:[#allocation2 + $0x60] sm:$0xff] %v1206
        %1237 = vst [vmem:[#allocation2 + $0x68] sm:$0xff] %v1207
        %1238 = vst [vmem:[#allocation2 + $0x70] sm:$0xff] %v1208
        %1239 = vst [vmem:[#allocation2 + $0x78] sm:$0xff] %v1209
        %1240 = vst [vmem:[#allocation2 + $0x80] sm:$0xff] %v1210
        %1241 = vst [vmem:[#allocation2 + $0x88] sm:$0xff] %v1211
        %1242 = vst [vmem:[#allocation2 + $0x90] sm:$0xff] %v1212
        %1243 = vst [vmem:[#allocation2 + $0x98] sm:$0xff] %v1213
        %1244 = vst [vmem:[#allocation2 + $0xa0] sm:$0xff] %v1214
        %1245 = vst [vmem:[#allocation2 + $0xa8] sm:$0xff] %v1215
        %1246 = vst [vmem:[#allocation2 + $0xb0] sm:$0xff] %v1216
        %1247 = vst [vmem:[#allocation2 + $0xb8] sm:$0xff] %v1217
        %1248 = vst [vmem:[#allocation2 + $0xc0] sm:$0xff] %v1218
        %1249 = vst [vmem:[#allocation2 + $0xc8] sm:$0xff] %v1219
        %1250 = vst [vmem:[#allocation2 + $0xd0] sm:$0xff] %v1220
        %1251 = vst [vmem:[#allocation2 + $0xd8] sm:$0xff] %v1221
        %1252 = vst [vmem:[#allocation2 + $0xe0] sm:$0xff] %v1222
        %1253 = vst [vmem:[#allocation2 + $0xe8] sm:$0xff] %v1223
        %v1254 = vld [vmem:[#allocation9] sm:$0xff]
        %v1255 = vld [vmem:[#allocation9 + $0x8] sm:$0x1]
        %v1256 = vld [vmem:[#allocation2] sm:$0xff]
        %v1257 = vld [vmem:[#allocation2 + $0x8] sm:$0xff]
        %v1258 = vld [vmem:[#allocation2 + $0x18] sm:$0xff]
        %v1259 = vld [vmem:[#allocation2 + $0x20] sm:$0xff]
        %v1260 = vld [vmem:[#allocation2 + $0x30] sm:$0xff]
        %v1261 = vld [vmem:[#allocation2 + $0x38] sm:$0xff]
        %v1262 = vld [vmem:[#allocation2 + $0x48] sm:$0xff]
        %v1263 = vld [vmem:[#allocation2 + $0x50] sm:$0xff]
        %v1264 = vld [vmem:[#allocation2 + $0x60] sm:$0xff]
        %v1265 = vld [vmem:[#allocation2 + $0x68] sm:$0xff]
        %v1266 = vld [vmem:[#allocation2 + $0x78] sm:$0xff]
        %v1267 = vld [vmem:[#allocation2 + $0x80] sm:$0xff]
        %v1268 = vld [vmem:[#allocation2 + $0x90] sm:$0xff]
        %v1269 = vld [vmem:[#allocation2 + $0x98] sm:$0xff]
        %v1270 = vld [vmem:[#allocation2 + $0xa8] sm:$0xff]
        %v1271 = vld [vmem:[#allocation2 + $0xb0] sm:$0xff]
        %v1272 = vld [vmem:[#allocation2 + $0xc0] sm:$0xff]
        %v1273 = vld [vmem:[#allocation2 + $0xc8] sm:$0xff]
        %v1274 = vld [vmem:[#allocation2 + $0xd8] sm:$0xff]
        %v1275 = vld [vmem:[#allocation2 + $0xe0] sm:$0xff]
        %v1276 = vperm.slane %v1254, 0
        %v1277 = vmul.f32 %v1256, %v1276
        %v1278 = vmul.f32 %v1257, %v1276
        %v1279 = vmul.f32 %v1258, %v1276
        %v1280 = vmul.f32 %v1259, %v1276
        %v1281 = vmul.f32 %v1260, %v1276
        %v1282 = vmul.f32 %v1261, %v1276
        %v1283 = vmul.f32 %v1262, %v1276
        %v1284 = vmul.f32 %v1263, %v1276
        %v1285 = vmul.f32 %v1264, %v1276
        %v1286 = vmul.f32 %v1265, %v1276
        %v1287 = vmul.f32 %v1266, %v1276
        %v1288 = vmul.f32 %v1267, %v1276
        %v1289 = vmul.f32 %v1268, %v1276
        %v1290 = vmul.f32 %v1269, %v1276
        %v1291 = vmul.f32 %v1270, %v1276
        %v1292 = vmul.f32 %v1271, %v1276
        %v1293 = vadd.f32 %v1277, 0.0
        %v1294 = vadd.f32 %v1278, 0.0
        %v1295 = vadd.f32 %v1279, 0.0
        %v1296 = vadd.f32 %v1280, 0.0
        %v1297 = vadd.f32 %v1281, 0.0
        %v1298 = vadd.f32 %v1282, 0.0
        %v1299 = vadd.f32 %v1283, 0.0
        %v1300 = vadd.f32 %v1284, 0.0
        %v1301 = vadd.f32 %v1285, 0.0
        %v1302 = vadd.f32 %v1286, 0.0
        %v1303 = vadd.f32 %v1287, 0.0
        %v1304 = vadd.f32 %v1288, 0.0
        %v1305 = vadd.f32 %v1289, 0.0
        %v1306 = vadd.f32 %v1290, 0.0
        %v1307 = vadd.f32 %v1291, 0.0
        %v1308 = vadd.f32 %v1292, 0.0
        %v1309 = vperm.slane %v1254, 3
        %v1310 = vmul.f32 %v1258, %v1309
        %v1311 = vmul.f32 %v1259, %v1309
        %v1312 = vmul.f32 %v1260, %v1309
        %v1313 = vmul.f32 %v1261, %v1309
        %v1314 = vmul.f32 %v1262, %v1309
        %v1315 = vmul.f32 %v1263, %v1309
        %v1316 = vmul.f32 %v1264, %v1309
        %v1317 = vmul.f32 %v1265, %v1309
        %v1318 = vmul.f32 %v1266, %v1309
        %v1319 = vmul.f32 %v1267, %v1309
        %v1320 = vmul.f32 %v1268, %v1309
        %v1321 = vmul.f32 %v1269, %v1309
        %v1322 = vmul.f32 %v1270, %v1309
        %v1323 = vmul.f32 %v1271, %v1309
        %v1324 = vmul.f32 %v1272, %v1309
        %v1325 = vmul.f32 %v1273, %v1309
        %v1326 = vadd.f32 %v1293, %v1310
        %v1327 = vadd.f32 %v1294, %v1311
        %v1328 = vadd.f32 %v1295, %v1312
        %v1329 = vadd.f32 %v1296, %v1313
        %v1330 = vadd.f32 %v1297, %v1314
        %v1331 = vadd.f32 %v1298, %v1315
        %v1332 = vadd.f32 %v1299, %v1316
        %v1333 = vadd.f32 %v1300, %v1317
        %v1334 = vadd.f32 %v1301, %v1318
        %v1335 = vadd.f32 %v1302, %v1319
        %v1336 = vadd.f32 %v1303, %v1320
        %v1337 = vadd.f32 %v1304, %v1321
        %v1338 = vadd.f32 %v1305, %v1322
        %v1339 = vadd.f32 %v1306, %v1323
        %v1340 = vadd.f32 %v1307, %v1324
        %v1341 = vadd.f32 %v1308, %v1325
        %v1342 = vperm.slane %v1254, 6
        %v1343 = vmul.f32 %v1260, %v1342
        %v1344 = vmul.f32 %v1261, %v1342
        %v1345 = vmul.f32 %v1262, %v1342
        %v1346 = vmul.f32 %v1263, %v1342
        %v1347 = vmul.f32 %v1264, %v1342
        %v1348 = vmul.f32 %v1265, %v1342
        %v1349 = vmul.f32 %v1266, %v1342
        %v1350 = vmul.f32 %v1267, %v1342
        %v1351 = vmul.f32 %v1268, %v1342
        %v1352 = vmul.f32 %v1269, %v1342
        %v1353 = vmul.f32 %v1270, %v1342
        %v1354 = vmul.f32 %v1271, %v1342
        %v1355 = vmul.f32 %v1272, %v1342
        %v1356 = vmul.f32 %v1273, %v1342
        %v1357 = vmul.f32 %v1274, %v1342
        %v1358 = vmul.f32 %v1275, %v1342
        %v1359 = vadd.f32 %v1326, %v1343
        %v1360 = vadd.f32 %v1327, %v1344
        %v1361 = vadd.f32 %v1328, %v1345
        %v1362 = vadd.f32 %v1329, %v1346
        %v1363 = vadd.f32 %v1330, %v1347
        %v1364 = vadd.f32 %v1331, %v1348
        %v1365 = vadd.f32 %v1332, %v1349
        %v1366 = vadd.f32 %v1333, %v1350
        %v1367 = vadd.f32 %v1334, %v1351
        %v1368 = vadd.f32 %v1335, %v1352
        %v1369 = vadd.f32 %v1336, %v1353
        %v1370 = vadd.f32 %v1337, %v1354
        %v1371 = vadd.f32 %v1338, %v1355
        %v1372 = vadd.f32 %v1339, %v1356
        %v1373 = vadd.f32 %v1340, %v1357
        %v1374 = vadd.f32 %v1341, %v1358
        %v1375 = vld [vmem:[#allocation2 + $0x1] sm:$0xff]
        %v1376 = vld [vmem:[#allocation2 + $0x9] sm:$0xff]
        %v1377 = vld [vmem:[#allocation2 + $0x19] sm:$0xff]
        %v1378 = vld [vmem:[#allocation2 + $0x21] sm:$0xff]
        %v1379 = vld [vmem:[#allocation2 + $0x31] sm:$0xff]
        %v1380 = vld [vmem:[#allocation2 + $0x39] sm:$0xff]
        %v1381 = vld [vmem:[#allocation2 + $0x49] sm:$0xff]
        %v1382 = vld [vmem:[#allocation2 + $0x51] sm:$0xff]
        %v1383 = vld [vmem:[#allocation2 + $0x61] sm:$0xff]
        %v1384 = vld [vmem:[#allocation2 + $0x69] sm:$0xff]
        %v1385 = vld [vmem:[#allocation2 + $0x79] sm:$0xff]
        %v1386 = vld [vmem:[#allocation2 + $0x81] sm:$0xff]
        %v1387 = vld [vmem:[#allocation2 + $0x91] sm:$0xff]
        %v1388 = vld [vmem:[#allocation2 + $0x99] sm:$0xff]
        %v1389 = vld [vmem:[#allocation2 + $0xa9] sm:$0xff]
        %v1390 = vld [vmem:[#allocation2 + $0xb1] sm:$0xff]
        %v1391 = vld [vmem:[#allocation2 + $0xc1] sm:$0xff]
        %v1392 = vld [vmem:[#allocation2 + $0xc9] sm:$0xff]
        %v1393 = vld [vmem:[#allocation2 + $0xd9] sm:$0xff]
        %v1394 = vld [vmem:[#allocation2 + $0xe1] sm:$0xff]
        %v1395 = vperm.slane %v1254, 1
        %v1396 = vmul.f32 %v1375, %v1395
        %v1397 = vmul.f32 %v1376, %v1395
        %v1398 = vmul.f32 %v1377, %v1395
        %v1399 = vmul.f32 %v1378, %v1395
        %v1400 = vmul.f32 %v1379, %v1395
        %v1401 = vmul.f32 %v1380, %v1395
        %v1402 = vmul.f32 %v1381, %v1395
        %v1403 = vmul.f32 %v1382, %v1395
        %v1404 = vmul.f32 %v1383, %v1395
        %v1405 = vmul.f32 %v1384, %v1395
        %v1406 = vmul.f32 %v1385, %v1395
        %v1407 = vmul.f32 %v1386, %v1395
        %v1408 = vmul.f32 %v1387, %v1395
        %v1409 = vmul.f32 %v1388, %v1395
        %v1410 = vmul.f32 %v1389, %v1395
        %v1411 = vmul.f32 %v1390, %v1395
        %v1412 = vadd.f32 %v1359, %v1396
        %v1413 = vadd.f32 %v1360, %v1397
        %v1414 = vadd.f32 %v1361, %v1398
        %v1415 = vadd.f32 %v1362, %v1399
        %v1416 = vadd.f32 %v1363, %v1400
        %v1417 = vadd.f32 %v1364, %v1401
        %v1418 = vadd.f32 %v1365, %v1402
        %v1419 = vadd.f32 %v1366, %v1403
        %v1420 = vadd.f32 %v1367, %v1404
        %v1421 = vadd.f32 %v1368, %v1405
        %v1422 = vadd.f32 %v1369, %v1406
        %v1423 = vadd.f32 %v1370, %v1407
        %v1424 = vadd.f32 %v1371, %v1408
        %v1425 = vadd.f32 %v1372, %v1409
        %v1426 = vadd.f32 %v1373, %v1410
        %v1427 = vadd.f32 %v1374, %v1411
        %v1428 = vperm.slane %v1254, 4
        %v1429 = vmul.f32 %v1377, %v1428
        %v1430 = vmul.f32 %v1378, %v1428
        %v1431 = vmul.f32 %v1379, %v1428
        %v1432 = vmul.f32 %v1380, %v1428
        %v1433 = vmul.f32 %v1381, %v1428
        %v1434 = vmul.f32 %v1382, %v1428
        %v1435 = vmul.f32 %v1383, %v1428
        %v1436 = vmul.f32 %v1384, %v1428
        %v1437 = vmul.f32 %v1385, %v1428
        %v1438 = vmul.f32 %v1386, %v1428
        %v1439 = vmul.f32 %v1387, %v1428
        %v1440 = vmul.f32 %v1388, %v1428
        %v1441 = vmul.f32 %v1389, %v1428
        %v1442 = vmul.f32 %v1390, %v1428
        %v1443 = vmul.f32 %v1391, %v1428
        %v1444 = vmul.f32 %v1392, %v1428
        %v1445 = vadd.f32 %v1412, %v1429
        %v1446 = vadd.f32 %v1413, %v1430
        %v1447 = vadd.f32 %v1414, %v1431
        %v1448 = vadd.f32 %v1415, %v1432
        %v1449 = vadd.f32 %v1416, %v1433
        %v1450 = vadd.f32 %v1417, %v1434
        %v1451 = vadd.f32 %v1418, %v1435
        %v1452 = vadd.f32 %v1419, %v1436
        %v1453 = vadd.f32 %v1420, %v1437
        %v1454 = vadd.f32 %v1421, %v1438
        %v1455 = vadd.f32 %v1422, %v1439
        %v1456 = vadd.f32 %v1423, %v1440
        %v1457 = vadd.f32 %v1424, %v1441
        %v1458 = vadd.f32 %v1425, %v1442
        %v1459 = vadd.f32 %v1426, %v1443
        %v1460 = vadd.f32 %v1427, %v1444
        %v1461 = vperm.slane %v1254, 7
        %v1462 = vmul.f32 %v1379, %v1461
        %v1463 = vmul.f32 %v1380, %v1461
        %v1464 = vmul.f32 %v1381, %v1461
        %v1465 = vmul.f32 %v1382, %v1461
        %v1466 = vmul.f32 %v1383, %v1461
        %v1467 = vmul.f32 %v1384, %v1461
        %v1468 = vmul.f32 %v1385, %v1461
        %v1469 = vmul.f32 %v1386, %v1461
        %v1470 = vmul.f32 %v1387, %v1461
        %v1471 = vmul.f32 %v1388, %v1461
        %v1472 = vmul.f32 %v1389, %v1461
        %v1473 = vmul.f32 %v1390, %v1461
        %v1474 = vmul.f32 %v1391, %v1461
        %v1475 = vmul.f32 %v1392, %v1461
        %v1476 = vmul.f32 %v1393, %v1461
        %v1477 = vmul.f32 %v1394, %v1461
        %v1478 = vadd.f32 %v1445, %v1462
        %v1479 = vadd.f32 %v1446, %v1463
        %v1480 = vadd.f32 %v1447, %v1464
        %v1481 = vadd.f32 %v1448, %v1465
        %v1482 = vadd.f32 %v1449, %v1466
        %v1483 = vadd.f32 %v1450, %v1467
        %v1484 = vadd.f32 %v1451, %v1468
        %v1485 = vadd.f32 %v1452, %v1469
        %v1486 = vadd.f32 %v1453, %v1470
        %v1487 = vadd.f32 %v1454, %v1471
        %v1488 = vadd.f32 %v1455, %v1472
        %v1489 = vadd.f32 %v1456, %v1473
        %v1490 = vadd.f32 %v1457, %v1474
        %v1491 = vadd.f32 %v1458, %v1475
        %v1492 = vadd.f32 %v1459, %v1476
        %v1493 = vadd.f32 %v1460, %v1477
        %v1494 = vld [vmem:[#allocation2 + $0x2] sm:$0xff]
        %v1495 = vld [vmem:[#allocation2 + $0xa] sm:$0xff]
        %v1496 = vld [vmem:[#allocation2 + $0x1a] sm:$0xff]
        %v1497 = vld [vmem:[#allocation2 + $0x22] sm:$0xff]
        %v1498 = vld [vmem:[#allocation2 + $0x32] sm:$0xff]
        %v1499 = vld [vmem:[#allocation2 + $0x3a] sm:$0xff]
        %v1500 = vld [vmem:[#allocation2 + $0x4a] sm:$0xff]
        %v1501 = vld [vmem:[#allocation2 + $0x52] sm:$0xff]
        %v1502 = vld [vmem:[#allocation2 + $0x62] sm:$0xff]
        %v1503 = vld [vmem:[#allocation2 + $0x6a] sm:$0xff]
        %v1504 = vld [vmem:[#allocation2 + $0x7a] sm:$0xff]
        %v1505 = vld [vmem:[#allocation2 + $0x82] sm:$0xff]
        %v1506 = vld [vmem:[#allocation2 + $0x92] sm:$0xff]
        %v1507 = vld [vmem:[#allocation2 + $0x9a] sm:$0xff]
        %v1508 = vld [vmem:[#allocation2 + $0xaa] sm:$0xff]
        %v1509 = vld [vmem:[#allocation2 + $0xb2] sm:$0xff]
        %v1510 = vld [vmem:[#allocation2 + $0xc2] sm:$0xff]
        %v1511 = vld [vmem:[#allocation2 + $0xca] sm:$0xff]
        %v1512 = vld [vmem:[#allocation2 + $0xda] sm:$0xff]
        %v1513 = vld [vmem:[#allocation2 + $0xe2] sm:$0xff]
        %v1514 = vperm.slane %v1254, 2
        %v1515 = vmul.f32 %v1494, %v1514
        %v1516 = vmul.f32 %v1495, %v1514
        %v1517 = vmul.f32 %v1496, %v1514
        %v1518 = vmul.f32 %v1497, %v1514
        %v1519 = vmul.f32 %v1498, %v1514
        %v1520 = vmul.f32 %v1499, %v1514
        %v1521 = vmul.f32 %v1500, %v1514
        %v1522 = vmul.f32 %v1501, %v1514
        %v1523 = vmul.f32 %v1502, %v1514
        %v1524 = vmul.f32 %v1503, %v1514
        %v1525 = vmul.f32 %v1504, %v1514
        %v1526 = vmul.f32 %v1505, %v1514
        %v1527 = vmul.f32 %v1506, %v1514
        %v1528 = vmul.f32 %v1507, %v1514
        %v1529 = vmul.f32 %v1508, %v1514
        %v1530 = vmul.f32 %v1509, %v1514
        %v1531 = vadd.f32 %v1478, %v1515
        %v1532 = vadd.f32 %v1479, %v1516
        %v1533 = vadd.f32 %v1480, %v1517
        %v1534 = vadd.f32 %v1481, %v1518
        %v1535 = vadd.f32 %v1482, %v1519
        %v1536 = vadd.f32 %v1483, %v1520
        %v1537 = vadd.f32 %v1484, %v1521
        %v1538 = vadd.f32 %v1485, %v1522
        %v1539 = vadd.f32 %v1486, %v1523
        %v1540 = vadd.f32 %v1487, %v1524
        %v1541 = vadd.f32 %v1488, %v1525
        %v1542 = vadd.f32 %v1489, %v1526
        %v1543 = vadd.f32 %v1490, %v1527
        %v1544 = vadd.f32 %v1491, %v1528
        %v1545 = vadd.f32 %v1492, %v1529
        %v1546 = vadd.f32 %v1493, %v1530
        %v1547 = vperm.slane %v1254, 5
        %v1548 = vmul.f32 %v1496, %v1547
        %v1549 = vmul.f32 %v1497, %v1547
        %v1550 = vmul.f32 %v1498, %v1547
        %v1551 = vmul.f32 %v1499, %v1547
        %v1552 = vmul.f32 %v1500, %v1547
        %v1553 = vmul.f32 %v1501, %v1547
        %v1554 = vmul.f32 %v1502, %v1547
        %v1555 = vmul.f32 %v1503, %v1547
        %v1556 = vmul.f32 %v1504, %v1547
        %v1557 = vmul.f32 %v1505, %v1547
        %v1558 = vmul.f32 %v1506, %v1547
        %v1559 = vmul.f32 %v1507, %v1547
        %v1560 = vmul.f32 %v1508, %v1547
        %v1561 = vmul.f32 %v1509, %v1547
        %v1562 = vmul.f32 %v1510, %v1547
        %v1563 = vmul.f32 %v1511, %v1547
        %v1564 = vadd.f32 %v1531, %v1548
        %v1565 = vadd.f32 %v1532, %v1549
        %v1566 = vadd.f32 %v1533, %v1550
        %v1567 = vadd.f32 %v1534, %v1551
        %v1568 = vadd.f32 %v1535, %v1552
        %v1569 = vadd.f32 %v1536, %v1553
        %v1570 = vadd.f32 %v1537, %v1554
        %v1571 = vadd.f32 %v1538, %v1555
        %v1572 = vadd.f32 %v1539, %v1556
        %v1573 = vadd.f32 %v1540, %v1557
        %v1574 = vadd.f32 %v1541, %v1558
        %v1575 = vadd.f32 %v1542, %v1559
        %v1576 = vadd.f32 %v1543, %v1560
        %v1577 = vadd.f32 %v1544, %v1561
        %v1578 = vadd.f32 %v1545, %v1562
        %v1579 = vadd.f32 %v1546, %v1563
        %v1580 = vperm.slane %v1255, 0
        %v1581 = vmul.f32 %v1498, %v1580
        %v1582 = vmul.f32 %v1499, %v1580
        %v1583 = vmul.f32 %v1500, %v1580
        %v1584 = vmul.f32 %v1501, %v1580
        %v1585 = vmul.f32 %v1502, %v1580
        %v1586 = vmul.f32 %v1503, %v1580
        %v1587 = vmul.f32 %v1504, %v1580
        %v1588 = vmul.f32 %v1505, %v1580
        %v1589 = vmul.f32 %v1506, %v1580
        %v1590 = vmul.f32 %v1507, %v1580
        %v1591 = vmul.f32 %v1508, %v1580
        %v1592 = vmul.f32 %v1509, %v1580
        %v1593 = vmul.f32 %v1510, %v1580
        %v1594 = vmul.f32 %v1511, %v1580
        %v1595 = vmul.f32 %v1512, %v1580
        %v1596 = vmul.f32 %v1513, %v1580
        %v1597 = vadd.f32 %v1564, %v1581
        %v1598 = vadd.f32 %v1565, %v1582
        %v1599 = vadd.f32 %v1566, %v1583
        %v1600 = vadd.f32 %v1567, %v1584
        %v1601 = vadd.f32 %v1568, %v1585
        %v1602 = vadd.f32 %v1569, %v1586
        %v1603 = vadd.f32 %v1570, %v1587
        %v1604 = vadd.f32 %v1571, %v1588
        %v1605 = vadd.f32 %v1572, %v1589
        %v1606 = vadd.f32 %v1573, %v1590
        %v1607 = vadd.f32 %v1574, %v1591
        %v1608 = vadd.f32 %v1575, %v1592
        %v1609 = vadd.f32 %v1576, %v1593
        %v1610 = vadd.f32 %v1577, %v1594
        %v1611 = vadd.f32 %v1578, %v1595
        %v1612 = vadd.f32 %v1579, %v1596
        %v1613 = vmul.f32 %v1597, %v1597
        %v1614 = vmul.f32 %v1598, %v1598
        %v1615 = vmul.f32 %v1599, %v1599
        %v1616 = vmul.f32 %v1600, %v1600
        %v1617 = vmul.f32 %v1601, %v1601
        %v1618 = vmul.f32 %v1602, %v1602
        %v1619 = vmul.f32 %v1603, %v1603
        %v1620 = vmul.f32 %v1604, %v1604
        %v1621 = vmul.f32 %v1605, %v1605
        %v1622 = vmul.f32 %v1606, %v1606
        %v1623 = vmul.f32 %v1607, %v1607
        %v1624 = vmul.f32 %v1608, %v1608
        %v1625 = vmul.f32 %v1609, %v1609
        %v1626 = vmul.f32 %v1610, %v1610
        %v1627 = vmul.f32 %v1611, %v1611
        %v1628 = vmul.f32 %v1612, %v1612
        %v1629 = vpack.c.bf16 %v1614, %v1613
        %v1630 = vpack.c.bf16 %v1616, %v1615
        %v1631 = vpack.c.bf16 %v1618, %v1617
        %v1632 = vpack.c.bf16 %v1620, %v1619
        %v1633 = vpack.c.bf16 %v1622, %v1621
        %v1634 = vpack.c.bf16 %v1624, %v1623
        %v1635 = vpack.c.bf16 %v1626, %v1625
        %v1636 = vpack.c.bf16 %v1628, %v1627
        %v1637 = vld [vmem:[#allocation11] sm:$0xf]
        %v1638 = vld [vmem:[#allocation11 + $0x4] sm:$0xf]
        %v1639 = vld [vmem:[#allocation11 + $0x8] sm:$0xf]
        %v1640 = vld [vmem:[#allocation11 + $0xc] sm:$0xf]
        %v1641 = vld [vmem:[#allocation11 + $0x10] sm:$0xf]
        %v1642 = vld [vmem:[#allocation11 + $0x14] sm:$0xf]
        %v1643 = vld [vmem:[#allocation11 + $0x18] sm:$0xf]
        %v1644 = vld [vmem:[#allocation11 + $0x1c] sm:$0xf]
        %v1645 = vld [vmem:[#allocation11 + $0x20] sm:$0xf]
        %v1646 = vld [vmem:[#allocation11 + $0x24] sm:$0xf]
        %v1647 = vld [vmem:[#allocation11 + $0x28] sm:$0xf]
        %v1648 = vld [vmem:[#allocation11 + $0x2c] sm:$0xf]
        %v1649 = vld [vmem:[#allocation11 + $0x30] sm:$0xf]
        %v1650 = vld [vmem:[#allocation11 + $0x34] sm:$0xf]
        %v1651 = vld [vmem:[#allocation11 + $0x38] sm:$0xf]
        %v1652 = vld [vmem:[#allocation11 + $0x3c] sm:$0xf]
        %v1653 = vld [vmem:[%s6] sm:$0x1]
        %v1655 = vperm.slane %v1653, 0
        %v1673 = vunpack.c.l.b16 %v1637
        %v1674 = vunpack.c.l.b16 %v1638
        %v1675 = vunpack.c.l.b16 %v1639
        %v1676 = vunpack.c.l.b16 %v1640
        %v1677 = vunpack.c.l.b16 %v1641
        %v1678 = vunpack.c.l.b16 %v1642
        %v1679 = vunpack.c.l.b16 %v1643
        %v1680 = vunpack.c.l.b16 %v1644
        %v1681 = vunpack.c.l.b16 %v1645
        %v1682 = vunpack.c.l.b16 %v1646
        %v1683 = vunpack.c.l.b16 %v1647
        %v1684 = vunpack.c.l.b16 %v1648
        %v1685 = vunpack.c.l.b16 %v1649
        %v1686 = vunpack.c.l.b16 %v1650
        %v1687 = vunpack.c.l.b16 %v1651
        %v1688 = vunpack.c.l.b16 %v1652
        %v1689 = vpack.c.b16 %v1674, %v1673
        %v1690 = vpack.c.b16 %v1676, %v1675
        %v1691 = vpack.c.b16 %v1678, %v1677
        %v1692 = vpack.c.b16 %v1680, %v1679
        %v1693 = vpack.c.b16 %v1682, %v1681
        %v1694 = vpack.c.b16 %v1684, %v1683
        %v1695 = vpack.c.b16 %v1686, %v1685
        %v1696 = vpack.c.b16 %v1688, %v1687
        %1705 = vmatpush.bf16.msra.mxu0 %v1696
        %1706 = vmatpush.bf16.msra.mxu0 %v1695
        %1707 = vmatpush.bf16.msra.mxu0 %v1694
        %1708 = vmatpush.bf16.msra.mxu0 %v1693
        %1709 = vmatpush.bf16.msra.mxu0 %v1692
        %1710 = vmatpush.bf16.msra.mxu0 %v1691
        %1711 = vmatpush.bf16.msra.mxu0 %v1690
        %1712 = vmatpush.bf16.msra.mxu0 %v1689
        %1713 = vmatmul.bf16.gmra.mxu0 %v1629
        %v1714 = vpop.f32.mrf.mxu0
        %v1715 = vadd.f32 %v1655, %v1714
        %v1716 = vpop.f32.mrf.mxu0
        %v1717 = vadd.f32 %v1655, %v1716
        %1718 = vmatmul.bf16.gmra.mxu0 %v1630
        %v1719 = vpop.f32.mrf.mxu0
        %v1720 = vadd.f32 %v1655, %v1719
        %v1721 = vpop.f32.mrf.mxu0
        %v1722 = vadd.f32 %v1655, %v1721
        %1723 = vmatmul.bf16.gmra.mxu0 %v1631
        %v1724 = vpop.f32.mrf.mxu0
        %v1725 = vadd.f32 %v1655, %v1724
        %v1726 = vpop.f32.mrf.mxu0
        %v1727 = vadd.f32 %v1655, %v1726
        %1728 = vmatmul.bf16.gmra.mxu0 %v1632
        %v1729 = vpop.f32.mrf.mxu0
        %v1730 = vadd.f32 %v1655, %v1729
        %v1731 = vpop.f32.mrf.mxu0
        %v1732 = vadd.f32 %v1655, %v1731
        %1733 = vmatmul.bf16.gmra.mxu0 %v1633
        %v1734 = vpop.f32.mrf.mxu0
        %v1735 = vadd.f32 %v1655, %v1734
        %v1736 = vpop.f32.mrf.mxu0
        %v1737 = vadd.f32 %v1655, %v1736
        %1738 = vmatmul.bf16.gmra.mxu0 %v1634
        %v1739 = vpop.f32.mrf.mxu0
        %v1740 = vadd.f32 %v1655, %v1739
        %v1741 = vpop.f32.mrf.mxu0
        %v1742 = vadd.f32 %v1655, %v1741
        %1743 = vmatmul.bf16.gmra.mxu0 %v1635
        %v1744 = vpop.f32.mrf.mxu0
        %v1745 = vadd.f32 %v1655, %v1744
        %v1746 = vpop.f32.mrf.mxu0
        %v1747 = vadd.f32 %v1655, %v1746
        %1748 = vmatmul.bf16.gmra.mxu0 %v1636
        %v1749 = vpop.f32.mrf.mxu0
        %v1750 = vadd.f32 %v1655, %v1749
        %v1751 = vpop.f32.mrf.mxu0
        %v1752 = vadd.f32 %v1655, %v1751
        %1753 = vdwg.mxu0
        %v1754 = vrsqrt.pop %v1715
        %v1755 = vmul.f32 %v1754, %v1715
        %v1756 = vmul.f32 %v1755, %v1754
        %v1757 = vmul.f32 0.5, %v1756
        %v1758 = vsub.f32 1.5, %v1757
        %v1759 = vmul.f32 %v1754, %v1758
        %vm1760 = vweird.f32 %v1715
        %vm1761 = vweird.f32 %v1754
        %vm1762 = vmor %vm1760, %vm1761
        %v1763 = vsel %vm1762, %v1754, %v1759
        %v1764 = vrsqrt.pop %v1717
        %v1765 = vmul.f32 %v1764, %v1717
        %v1766 = vmul.f32 %v1765, %v1764
        %v1767 = vmul.f32 0.5, %v1766
        %v1768 = vsub.f32 1.5, %v1767
        %v1769 = vmul.f32 %v1764, %v1768
        %vm1770 = vweird.f32 %v1717
        %vm1771 = vweird.f32 %v1764
        %vm1772 = vmor %vm1770, %vm1771
        %v1773 = vsel %vm1772, %v1764, %v1769
        %v1774 = vrsqrt.pop %v1720
        %v1775 = vmul.f32 %v1774, %v1720
        %v1776 = vmul.f32 %v1775, %v1774
        %v1777 = vmul.f32 0.5, %v1776
        %v1778 = vsub.f32 1.5, %v1777
        %v1779 = vmul.f32 %v1774, %v1778
        %vm1780 = vweird.f32 %v1720
        %vm1781 = vweird.f32 %v1774
        %vm1782 = vmor %vm1780, %vm1781
        %v1783 = vsel %vm1782, %v1774, %v1779
        %v1784 = vrsqrt.pop %v1722
        %v1785 = vmul.f32 %v1784, %v1722
        %v1786 = vmul.f32 %v1785, %v1784
        %v1787 = vmul.f32 0.5, %v1786
        %v1788 = vsub.f32 1.5, %v1787
        %v1789 = vmul.f32 %v1784, %v1788
        %vm1790 = vweird.f32 %v1722
        %vm1791 = vweird.f32 %v1784
        %vm1792 = vmor %vm1790, %vm1791
        %v1793 = vsel %vm1792, %v1784, %v1789
        %v1794 = vrsqrt.pop %v1725
        %v1795 = vmul.f32 %v1794, %v1725
        %v1796 = vmul.f32 %v1795, %v1794
        %v1797 = vmul.f32 0.5, %v1796
        %v1798 = vsub.f32 1.5, %v1797
        %v1799 = vmul.f32 %v1794, %v1798
        %vm1800 = vweird.f32 %v1725
        %vm1801 = vweird.f32 %v1794
        %vm1802 = vmor %vm1800, %vm1801
        %v1803 = vsel %vm1802, %v1794, %v1799
        %v1804 = vrsqrt.pop %v1727
        %v1805 = vmul.f32 %v1804, %v1727
        %v1806 = vmul.f32 %v1805, %v1804
        %v1807 = vmul.f32 0.5, %v1806
        %v1808 = vsub.f32 1.5, %v1807
        %v1809 = vmul.f32 %v1804, %v1808
        %vm1810 = vweird.f32 %v1727
        %vm1811 = vweird.f32 %v1804
        %vm1812 = vmor %vm1810, %vm1811
        %v1813 = vsel %vm1812, %v1804, %v1809
        %v1814 = vrsqrt.pop %v1730
        %v1815 = vmul.f32 %v1814, %v1730
        %v1816 = vmul.f32 %v1815, %v1814
        %v1817 = vmul.f32 0.5, %v1816
        %v1818 = vsub.f32 1.5, %v1817
        %v1819 = vmul.f32 %v1814, %v1818
        %vm1820 = vweird.f32 %v1730
        %vm1821 = vweird.f32 %v1814
        %vm1822 = vmor %vm1820, %vm1821
        %v1823 = vsel %vm1822, %v1814, %v1819
        %v1824 = vrsqrt.pop %v1732
        %v1825 = vmul.f32 %v1824, %v1732
        %v1826 = vmul.f32 %v1825, %v1824
        %v1827 = vmul.f32 0.5, %v1826
        %v1828 = vsub.f32 1.5, %v1827
        %v1829 = vmul.f32 %v1824, %v1828
        %vm1830 = vweird.f32 %v1732
        %vm1831 = vweird.f32 %v1824
        %vm1832 = vmor %vm1830, %vm1831
        %v1833 = vsel %vm1832, %v1824, %v1829
        %v1834 = vrsqrt.pop %v1735
        %v1835 = vmul.f32 %v1834, %v1735
        %v1836 = vmul.f32 %v1835, %v1834
        %v1837 = vmul.f32 0.5, %v1836
        %v1838 = vsub.f32 1.5, %v1837
        %v1839 = vmul.f32 %v1834, %v1838
        %vm1840 = vweird.f32 %v1735
        %vm1841 = vweird.f32 %v1834
        %vm1842 = vmor %vm1840, %vm1841
        %v1843 = vsel %vm1842, %v1834, %v1839
        %v1844 = vrsqrt.pop %v1737
        %v1845 = vmul.f32 %v1844, %v1737
        %v1846 = vmul.f32 %v1845, %v1844
        %v1847 = vmul.f32 0.5, %v1846
        %v1848 = vsub.f32 1.5, %v1847
        %v1849 = vmul.f32 %v1844, %v1848
        %vm1850 = vweird.f32 %v1737
        %vm1851 = vweird.f32 %v1844
        %vm1852 = vmor %vm1850, %vm1851
        %v1853 = vsel %vm1852, %v1844, %v1849
        %v1854 = vrsqrt.pop %v1740
        %v1855 = vmul.f32 %v1854, %v1740
        %v1856 = vmul.f32 %v1855, %v1854
        %v1857 = vmul.f32 0.5, %v1856
        %v1858 = vsub.f32 1.5, %v1857
        %v1859 = vmul.f32 %v1854, %v1858
        %vm1860 = vweird.f32 %v1740
        %vm1861 = vweird.f32 %v1854
        %vm1862 = vmor %vm1860, %vm1861
        %v1863 = vsel %vm1862, %v1854, %v1859
        %v1864 = vrsqrt.pop %v1742
        %v1865 = vmul.f32 %v1864, %v1742
        %v1866 = vmul.f32 %v1865, %v1864
        %v1867 = vmul.f32 0.5, %v1866
        %v1868 = vsub.f32 1.5, %v1867
        %v1869 = vmul.f32 %v1864, %v1868
        %vm1870 = vweird.f32 %v1742
        %vm1871 = vweird.f32 %v1864
        %vm1872 = vmor %vm1870, %vm1871
        %v1873 = vsel %vm1872, %v1864, %v1869
        %v1874 = vrsqrt.pop %v1745
        %v1875 = vmul.f32 %v1874, %v1745
        %v1876 = vmul.f32 %v1875, %v1874
        %v1877 = vmul.f32 0.5, %v1876
        %v1878 = vsub.f32 1.5, %v1877
        %v1879 = vmul.f32 %v1874, %v1878
        %vm1880 = vweird.f32 %v1745
        %vm1881 = vweird.f32 %v1874
        %vm1882 = vmor %vm1880, %vm1881
        %v1883 = vsel %vm1882, %v1874, %v1879
        %v1884 = vrsqrt.pop %v1747
        %v1885 = vmul.f32 %v1884, %v1747
        %v1886 = vmul.f32 %v1885, %v1884
        %v1887 = vmul.f32 0.5, %v1886
        %v1888 = vsub.f32 1.5, %v1887
        %v1889 = vmul.f32 %v1884, %v1888
        %vm1890 = vweird.f32 %v1747
        %vm1891 = vweird.f32 %v1884
        %vm1892 = vmor %vm1890, %vm1891
        %v1893 = vsel %vm1892, %v1884, %v1889
        %v1894 = vrsqrt.pop %v1750
        %v1895 = vmul.f32 %v1894, %v1750
        %v1896 = vmul.f32 %v1895, %v1894
        %v1897 = vmul.f32 0.5, %v1896
        %v1898 = vsub.f32 1.5, %v1897
        %v1899 = vmul.f32 %v1894, %v1898
        %vm1900 = vweird.f32 %v1750
        %vm1901 = vweird.f32 %v1894
        %vm1902 = vmor %vm1900, %vm1901
        %v1903 = vsel %vm1902, %v1894, %v1899
        %v1904 = vrsqrt.pop %v1752
        %v1905 = vmul.f32 %v1904, %v1752
        %v1906 = vmul.f32 %v1905, %v1904
        %v1907 = vmul.f32 0.5, %v1906
        %v1908 = vsub.f32 1.5, %v1907
        %v1909 = vmul.f32 %v1904, %v1908
        %vm1910 = vweird.f32 %v1752
        %vm1911 = vweird.f32 %v1904
        %vm1912 = vmor %vm1910, %vm1911
        %v1913 = vsel %vm1912, %v1904, %v1909
        %v1914 = vmul.f32 %v1597, %v1763
        %v1915 = vmul.f32 %v1598, %v1773
        %v1916 = vmul.f32 %v1599, %v1783
        %v1917 = vmul.f32 %v1600, %v1793
        %v1918 = vmul.f32 %v1601, %v1803
        %v1919 = vmul.f32 %v1602, %v1813
        %v1920 = vmul.f32 %v1603, %v1823
        %v1921 = vmul.f32 %v1604, %v1833
        %v1922 = vmul.f32 %v1605, %v1843
        %v1923 = vmul.f32 %v1606, %v1853
        %v1924 = vmul.f32 %v1607, %v1863
        %v1925 = vmul.f32 %v1608, %v1873
        %v1926 = vmul.f32 %v1609, %v1883
        %v1927 = vmul.f32 %v1610, %v1893
        %v1928 = vmul.f32 %v1611, %v1903
        %v1929 = vmul.f32 %v1612, %v1913
        %v1930 = vpack.c.bf16 %v1915, %v1914
        %v1931 = vpack.c.bf16 %v1917, %v1916
        %v1932 = vpack.c.bf16 %v1919, %v1918
        %v1933 = vpack.c.bf16 %v1921, %v1920
        %v1934 = vpack.c.bf16 %v1923, %v1922
        %v1935 = vpack.c.bf16 %v1925, %v1924
        %v1936 = vpack.c.bf16 %v1927, %v1926
        %v1937 = vpack.c.bf16 %v1929, %v1928
        %v1938 = vld [vmem:[#allocation12] sm:$0xf]
        %v1939 = vld [vmem:[#allocation12 + $0x4] sm:$0xf]
        %v1940 = vld [vmem:[#allocation12 + $0x8] sm:$0xf]
        %v1941 = vld [vmem:[#allocation12 + $0xc] sm:$0xf]
        %v1942 = vld [vmem:[#allocation12 + $0x10] sm:$0xf]
        %v1943 = vld [vmem:[#allocation12 + $0x14] sm:$0xf]
        %v1944 = vld [vmem:[#allocation12 + $0x18] sm:$0xf]
        %v1945 = vld [vmem:[#allocation12 + $0x1c] sm:$0xf]
        %v1946 = vld [vmem:[#allocation12 + $0x20] sm:$0xf]
        %v1947 = vld [vmem:[#allocation12 + $0x24] sm:$0xf]
        %v1948 = vld [vmem:[#allocation12 + $0x28] sm:$0xf]
        %v1949 = vld [vmem:[#allocation12 + $0x2c] sm:$0xf]
        %v1950 = vld [vmem:[#allocation12 + $0x30] sm:$0xf]
        %v1951 = vld [vmem:[#allocation12 + $0x34] sm:$0xf]
        %v1952 = vld [vmem:[#allocation12 + $0x38] sm:$0xf]
        %v1953 = vld [vmem:[#allocation12 + $0x3c] sm:$0xf]
        %v1970 = vunpack.c.l.b16 %v1938
        %v1971 = vunpack.c.l.b16 %v1939
        %v1972 = vunpack.c.l.b16 %v1940
        %v1973 = vunpack.c.l.b16 %v1941
        %v1974 = vunpack.c.l.b16 %v1942
        %v1975 = vunpack.c.l.b16 %v1943
        %v1976 = vunpack.c.l.b16 %v1944
        %v1977 = vunpack.c.l.b16 %v1945
        %v1978 = vunpack.c.l.b16 %v1946
        %v1979 = vunpack.c.l.b16 %v1947
        %v1980 = vunpack.c.l.b16 %v1948
        %v1981 = vunpack.c.l.b16 %v1949
        %v1982 = vunpack.c.l.b16 %v1950
        %v1983 = vunpack.c.l.b16 %v1951
        %v1984 = vunpack.c.l.b16 %v1952
        %v1985 = vunpack.c.l.b16 %v1953
        %v1986 = vpack.c.b16 %v1971, %v1970
        %v1987 = vpack.c.b16 %v1973, %v1972
        %v1988 = vpack.c.b16 %v1975, %v1974
        %v1989 = vpack.c.b16 %v1977, %v1976
        %v1990 = vpack.c.b16 %v1979, %v1978
        %v1991 = vpack.c.b16 %v1981, %v1980
        %v1992 = vpack.c.b16 %v1983, %v1982
        %v1993 = vpack.c.b16 %v1985, %v1984
        %2002 = vmatpush.bf16.msra.mxu0 %v1993
        %2003 = vmatpush.bf16.msra.mxu0 %v1992
        %2004 = vmatpush.bf16.msra.mxu0 %v1991
        %2005 = vmatpush.bf16.msra.mxu0 %v1990
        %2006 = vmatpush.bf16.msra.mxu0 %v1989
        %2007 = vmatpush.bf16.msra.mxu0 %v1988
        %2008 = vmatpush.bf16.msra.mxu0 %v1987
        %2009 = vmatpush.bf16.msra.mxu0 %v1986
        %2010 = vmatmul.bf16.gmra.mxu0 %v1930
        %v2011 = vpop.f32.mrf.mxu0
        %v2012 = vadd.f32 0.0, %v2011
        %v2013 = vpop.f32.mrf.mxu0
        %v2014 = vadd.f32 0.0, %v2013
        %2015 = vmatmul.bf16.gmra.mxu0 %v1931
        %v2016 = vpop.f32.mrf.mxu0
        %v2017 = vadd.f32 0.0, %v2016
        %v2018 = vpop.f32.mrf.mxu0
        %v2019 = vadd.f32 0.0, %v2018
        %2020 = vmatmul.bf16.gmra.mxu0 %v1932
        %v2021 = vpop.f32.mrf.mxu0
        %v2022 = vadd.f32 0.0, %v2021
        %v2023 = vpop.f32.mrf.mxu0
        %v2024 = vadd.f32 0.0, %v2023
        %2025 = vmatmul.bf16.gmra.mxu0 %v1933
        %v2026 = vpop.f32.mrf.mxu0
        %v2027 = vadd.f32 0.0, %v2026
        %v2028 = vpop.f32.mrf.mxu0
        %v2029 = vadd.f32 0.0, %v2028
        %2030 = vmatmul.bf16.gmra.mxu0 %v1934
        %v2031 = vpop.f32.mrf.mxu0
        %v2032 = vadd.f32 0.0, %v2031
        %v2033 = vpop.f32.mrf.mxu0
        %v2034 = vadd.f32 0.0, %v2033
        %2035 = vmatmul.bf16.gmra.mxu0 %v1935
        %v2036 = vpop.f32.mrf.mxu0
        %v2037 = vadd.f32 0.0, %v2036
        %v2038 = vpop.f32.mrf.mxu0
        %v2039 = vadd.f32 0.0, %v2038
        %2040 = vmatmul.bf16.gmra.mxu0 %v1936
        %v2041 = vpop.f32.mrf.mxu0
        %v2042 = vadd.f32 0.0, %v2041
        %v2043 = vpop.f32.mrf.mxu0
        %v2044 = vadd.f32 0.0, %v2043
        %2045 = vmatmul.bf16.gmra.mxu0 %v1937
        %v2046 = vpop.f32.mrf.mxu0
        %v2047 = vadd.f32 0.0, %v2046
        %v2048 = vpop.f32.mrf.mxu0
        %v2049 = vadd.f32 0.0, %v2048
        %2050 = vdwg.mxu0
        %2051 = vst [vmem:[%s422] sm:$0xff] %v2012
        %2052 = vst [vmem:[%s422 + $0x8] sm:$0xff] %v2014
        %2053 = vst [vmem:[%s422 + $0x10] sm:$0xff] %v2017
        %2054 = vst [vmem:[%s422 + $0x18] sm:$0xff] %v2019
        %2055 = vst [vmem:[%s422 + $0x20] sm:$0xff] %v2022
        %2056 = vst [vmem:[%s422 + $0x28] sm:$0xff] %v2024
        %2057 = vst [vmem:[%s422 + $0x30] sm:$0xff] %v2027
        %2058 = vst [vmem:[%s422 + $0x38] sm:$0xff] %v2029
        %2059 = vst [vmem:[%s422 + $0x40] sm:$0xff] %v2032
        %2060 = vst [vmem:[%s422 + $0x48] sm:$0xff] %v2034
        %2061 = vst [vmem:[%s422 + $0x50] sm:$0xff] %v2037
        %2062 = vst [vmem:[%s422 + $0x58] sm:$0xff] %v2039
        %2063 = vst [vmem:[%s422 + $0x60] sm:$0xff] %v2042
        %2064 = vst [vmem:[%s422 + $0x68] sm:$0xff] %v2044
        %2065 = vst [vmem:[%s422 + $0x70] sm:$0xff] %v2047
        %2066 = vst [vmem:[%s422 + $0x78] sm:$0xff] %v2049
        %s2067 = sand.u32 %s223, 1
        %s2068 = scalar_lea.sflag [#allocation5], %s2067
        %s2069 = sand.u32 %s223, 1
        %s2070 = smul.addr %s2069, 128
        %s2071 = scalar_lea.vmem [#allocation14], %s2070
        // Predicated region
        $region77: #{tpu_custom_call.1} parent=51 // pred_check
          %p2072 = pneg %p233
        $region78: #{tpu_custom_call.1} parent=51 // pred_check_branch
          %2074 = sbr.rel (%p2072) target = $region80
        $region79: #{tpu_custom_call.1} parent=51 // pred_region
          %s2075 = smul.u32 16, %s33
          %2077 = vsyncadd %s2068, 0
          %s2078 = smul.addr %s32, 32
          %s2079 = sadd.s32 %s2075, %s2078
          %s2080 = smul.addr %s2079, 8
          %s2081 = scalar_lea.hbm %s8, %s2080
          %s2082 = sshll.u32 %s2071, 4
          %s2083 = int_to_ptr.vmem [resolvable:$true] %s2082
          %s2084 = sshll.u32 %s2081, 4
          %s2085 = int_to_ptr.hbm [resolvable:$true] %s2084
          %2090 = dma.vmem_to_hbm [thread:$0]  %s2083, 2048, %s2085, %s2068, 128, 128, 8
        $region80: #{tpu_custom_call.1} parent=51 // pred_fallthru
          _
      $region52: #{tpu_custom_call.1} parent=5 // pred_fallthru
        _
      %p2091 = scmp.le.s32.totalorder 2, %s23
      // Predicated region
      $region81: #{tpu_custom_call.1} parent=5 // pred_check
        %p2092 = pneg %p2091
      $region82: #{tpu_custom_call.1} parent=5 // pred_check_branch
        %2094 = sbr.rel (%p2092) target = $region84
      $region83: #{tpu_custom_call.1} parent=5 // pred_region
        %s2095 = ssub.s32 %s23, 2
        // Predicated region
        $region85: #{tpu_custom_call.1} parent=83 // pred_check
          %p2096 = pneg %p239
        $region86: #{tpu_custom_call.1} parent=83 // pred_check_branch
          %2098 = sbr.rel (%p2096) target = $region88
        $region87: #{tpu_custom_call.1} parent=83 // pred_region
          %s2099 = sand.u32 %s224, 1
          %s2100 = scalar_lea.sflag [#allocation5], %s2099
          %s2101 = sand.u32 %s224, 1
          %s2102 = smul.addr %s2101, 128
          %s2103 = scalar_lea.vmem [#allocation14], %s2102
          %2105 = dma.done %s2100, 2048
        $region88: #{tpu_custom_call.1} parent=83 // pred_fallthru
          _
      $region84: #{tpu_custom_call.1} parent=5 // pred_fallthru
        _
    $region6: #{tpu_custom_call.1} parent=1 // loop_footer
      %s27 = sadd.s32 1, %s23
    $region7: #{tpu_custom_call.1} parent=1 // loop_footer_branch
      %22 = sbr.rel target = $region3
    $region8: #{tpu_custom_call.1} parent=1 // loop_exit
      _
    %2106 = vsyncpa [#allocation4], 1
    %s2107 = scalar_lea.sflag [#allocation4], 1
    %2108 = vsyncpa %s2107, 1
    %2109 = vsyncpa [#allocation7], 1
    %2110 = vsyncpa [#allocation10], 1
    %2111 = vsyncpa [#allocation13], 1
    %2112 = vsyncpa [#allocation5], 1
    %s2113 = scalar_lea.sflag [#allocation5], 1
    %2114 = vsyncpa %s2113, 1

</llo_original>
